<compile_context>
chip_gen: v6e
topology: v6e:2x2x1
jax: 0.10.0
libtpu: 0.0.40
codegen_flags: <defaults>
</compile_context>

<pallas_src>
import jax
import jax.numpy as jnp
from jax.experimental import pallas as pl
from jax.experimental.pallas import tpu as pltpu


CIN = 9
CIN_PAD = 16                       # pad 9 -> 16 so layer-0 contraction is 48
CHANNELS = (CIN_PAD, 32, 64, 128, 256)


# ----------------------------------------------------------------------------
# Fused Pallas kernel
# ----------------------------------------------------------------------------
def _fused_encoder_kernel(x_ref,
                          w0_ref, b0_ref, w1_ref, b1_ref,
                          w2_ref, b2_ref, w3_ref, b3_ref,
                          o_ref,
                          s0, s1, s2, s3):
    """Conv1d(k3,p1)+ReLU x4 + MaxPool1d(2,2) for one tile of `bt` batch rows.

    x_ref : (bt, L, 9)          input tile, channels-last
    wN_ref: (3*CinN, CoutN)     tap-folded weights ((k, ci) row-major)
    bN_ref: (1, CoutN)
    o_ref : (bt, L//2, 256)
    sN    : (bt, L+2, CinN)     VMEM scratch with 1-row zero halo on each side
    """
    bt, L, _ = x_ref.shape

    # Zero the scratches once: rows 0 and L+1 provide the 'same' zero padding,
    # and lanes 9..15 of s0 provide the Cin 9->16 pad.  The halo rows / pad
    # lanes are never written afterwards, so they stay zero on later steps.
    @pl.when(pl.program_id(0) == 0)
    def _init():
        s0[...] = jnp.zeros_like(s0)
        s1[...] = jnp.zeros_like(s1)
        s2[...] = jnp.zeros_like(s2)
        s3[...] = jnp.zeros_like(s3)

    # Stage the input tile into the padded scratch (channels 0..8).
    s0[:, 1:L + 1, :CIN] = x_ref[...].astype(jnp.float32)

    def conv_relu(src, w_ref, b_ref):
        # Fold the 3 taps into the contraction dim:
        #   lhs[(b,l), (k,ci)] = src[b, l+k, ci]   -> one MXU matmul per layer.
        cin = src.shape[-1]
        lhs = jnp.concatenate(
            [src[:, 0:L, :], src[:, 1:L + 1, :], src[:, 2:L + 2, :]],
            axis=-1).reshape(bt * L, 3 * cin)
        acc = jnp.dot(lhs, w_ref[...], preferred_element_type=jnp.float32)
        return jnp.maximum(acc + b_ref[...], 0.0)          # (bt*L, Cout)

    a = conv_relu(s0, w0_ref, b0_ref)                      # (bt*L, 32)
    s1[:, 1:L + 1, :] = a.reshape(bt, L, CHANNELS[1])
    a = conv_relu(s1, w1_ref, b1_ref)                      # (bt*L, 64)
    s2[:, 1:L + 1, :] = a.reshape(bt, L, CHANNELS[2])
    a = conv_relu(s2, w2_ref, b2_ref)                      # (bt*L, 128)
    s3[:, 1:L + 1, :] = a.reshape(bt, L, CHANNELS[3])
    a = conv_relu(s3, w3_ref, b3_ref)                      # (bt*L, 256)

    # MaxPool1d(kernel=2, stride=2) fused into the epilogue; only the
    # lane-dense (256-wide) pooled result is stored to HBM.
    Lh = L // 2
    pooled = jnp.max(a.reshape(bt * Lh, 2, CHANNELS[4]), axis=1)
    o_ref[...] = pooled.reshape(bt, Lh, CHANNELS[4]).astype(o_ref.dtype)


# ----------------------------------------------------------------------------
# Wrapper
# ----------------------------------------------------------------------------
def encoder_forward(x_ncl, params):
    """x_ncl: (B, 9, L) in PyTorch NCL layout -> (B, 256, L//2)."""
    B, cin, L = x_ncl.shape
    assert cin == CIN
    assert L % 2 == 0, "MaxPool1d(2,2) expects even L (floor mode unsupported)"
    Lh = L // 2

    # Channels-last so the channel dim maps to TPU lanes.
    x = jnp.transpose(x_ncl, (0, 2, 1))                    # (B, L, 9)

    # Fold weights (3, Cin, Cout) -> (3*Cin, Cout); pad layer-0 Cin 9 -> 16.
    # These are tiny one-time constant transforms outside the kernel.
    (w0, b0), (w1, b1), (w2, b2), (w3, b3) = params
    w0 = jnp.pad(w0, ((0, 0), (0, CIN_PAD - CIN), (0, 0)))
    wf = [w.reshape(-1, w.shape[-1]) for w in (w0, w1, w2, w3)]
    bf = [b.reshape(1, -1) for b in (b0, b1, b2, b3)]

    # Batch tile: fold several rows into the matmul M dim per grid step.
    if B <= 8:
        bt = B
    elif B % 8 == 0:
        bt = 8
    else:
        bt = 1
    grid = (B // bt,)

    weight_specs = []
    for w, b in zip(wf, bf):
        weight_specs.append(pl.BlockSpec(w.shape, lambda i: (0, 0)))
        weight_specs.append(pl.BlockSpec(b.shape, lambda i: (0, 0)))

    # TODO(synk): for very long L on v7x (64 MiB VMEM), add an L-tile grid axis
    # with a 4-element halo and set vmem_limit_bytes explicitly.
    out = pl.pallas_call(
        _fused_encoder_kernel,
        out_shape=jax.ShapeDtypeStruct((B, Lh, CHANNELS[4]), x.dtype),
        grid=grid,
        in_specs=[pl.BlockSpec((bt, L, CIN), lambda i: (i, 0, 0))]
        + weight_specs,
        out_specs=pl.BlockSpec((bt, Lh, CHANNELS[4]), lambda i: (i, 0, 0)),
        scratch_shapes=[
            pltpu.VMEM((bt, L + 2, CHANNELS[0]), jnp.float32),
            pltpu.VMEM((bt, L + 2, CHANNELS[1]), jnp.float32),
            pltpu.VMEM((bt, L + 2, CHANNELS[2]), jnp.float32),
            pltpu.VMEM((bt, L + 2, CHANNELS[3]), jnp.float32),
        ],
        compiler_params=pltpu.CompilerParams(
            dimension_semantics=("parallel",)),
    )(x, wf[0], bf[0], wf[1], bf[1], wf[2], bf[2], wf[3], bf[3])

    # TODO(synk): drop this transpose if the consumer accepts channels-last.
    return jnp.transpose(out, (0, 2, 1))                   # (B, 256, L//2)


# ----------------------------------------------------------------------------
# Deterministic parameter init (mimics PyTorch Conv1d default uniform bounds)
# ----------------------------------------------------------------------------
def init_params(key):
    dims = [(9, 32), (32, 64), (64, 128), (128, 256)]
    params = []
    for cin, cout in dims:
        key, kw, kb = jax.random.split(key, 3)
        bound = 1.0 / float(cin * 3) ** 0.5
        w = jax.random.uniform(kw, (3, cin, cout), jnp.float32, -bound, bound)
        b = jax.random.uniform(kb, (cout,), jnp.float32, -bound, bound)
        params.append((w, b))
    return params


# ----------------------------------------------------------------------------
# Pure-JAX reference for verification
# ----------------------------------------------------------------------------
def encoder_reference(x_ncl, params):
    x = x_ncl  # (B, C, L)
    for (w, b) in params:
        wk = jnp.transpose(w, (2, 1, 0))  # (K, Cin, Cout) -> (Cout, Cin, K)
        x = jax.lax.conv_general_dilated(
            x, wk, window_strides=(1,), padding=((1, 1),),
            dimension_numbers=("NCH", "OIH", "NCH"))
        x = jnp.maximum(x + b[None, :, None], 0.0)
    x = jax.lax.reduce_window(
        x, -jnp.inf, jax.lax.max,
        window_dimensions=(1, 1, 2), window_strides=(1, 1, 2),
        padding="VALID")
    return x


if __name__ == "__main__":
    key = jax.random.PRNGKey(0)
    kx, kp = jax.random.split(key)
    B, Cin, L = 2, 9, 16
    x = jax.random.normal(kx, (B, Cin, L), jnp.float32)  # PyTorch NCL input
    params = init_params(kp)

    out = jax.jit(encoder_forward)(x, params)
    out = jax.block_until_ready(out)

    assert out.shape == (B, 256, L // 2), out.shape

    ref = encoder_reference(x, params)
    assert jnp.allclose(out, ref, rtol=1e-3, atol=1e-3), float(
        jnp.max(jnp.abs(out - ref)))

    print("KERNEL_OK")
</pallas_src>

<mosaic_0001>
module attributes {stable_mosaic.version = 11 : i64} {
  func.func @_fused_encoder_kernel(%arg0: i32, %arg1: memref<2x16x9xf32, #tpu.memory_space<vmem>>, %arg2: memref<48x32xf32, #tpu.memory_space<vmem>>, %arg3: memref<1x32xf32, #tpu.memory_space<vmem>>, %arg4: memref<96x64xf32, #tpu.memory_space<vmem>>, %arg5: memref<1x64xf32, #tpu.memory_space<vmem>>, %arg6: memref<192x128xf32, #tpu.memory_space<vmem>>, %arg7: memref<1x128xf32, #tpu.memory_space<vmem>>, %arg8: memref<384x256xf32, #tpu.memory_space<vmem>>, %arg9: memref<1x256xf32, #tpu.memory_space<vmem>>, %arg10: memref<2x8x256xf32, #tpu.memory_space<vmem>>, %arg11: memref<2x18x16xf32, #tpu.memory_space<vmem>>, %arg12: memref<2x18x32xf32, #tpu.memory_space<vmem>>, %arg13: memref<2x18x64xf32, #tpu.memory_space<vmem>>, %arg14: memref<2x18x128xf32, #tpu.memory_space<vmem>>) attributes {dimension_semantics = [#tpu.dimension_semantics<parallel>], iteration_bounds = array<i64: 1>, scalar_prefetch = 0 : i64, scratch_operands = 4 : i64, tpu.core_type = #tpu.core_type<tc>, window_params = [{transform_indices = @transform_0, window_bounds = array<i64: 2, 16, 9>}, {pipeline_mode = #tpu.pipeline_mode<synchronous>, transform_indices = @transform_1, window_bounds = array<i64: 48, 32>}, {pipeline_mode = #tpu.pipeline_mode<synchronous>, transform_indices = @transform_2, window_bounds = array<i64: 1, 32>}, {pipeline_mode = #tpu.pipeline_mode<synchronous>, transform_indices = @transform_3, window_bounds = array<i64: 96, 64>}, {pipeline_mode = #tpu.pipeline_mode<synchronous>, transform_indices = @transform_4, window_bounds = array<i64: 1, 64>}, {pipeline_mode = #tpu.pipeline_mode<synchronous>, transform_indices = @transform_5, window_bounds = array<i64: 192, 128>}, {pipeline_mode = #tpu.pipeline_mode<synchronous>, transform_indices = @transform_6, window_bounds = array<i64: 1, 128>}, {pipeline_mode = #tpu.pipeline_mode<synchronous>, transform_indices = @transform_7, window_bounds = array<i64: 384, 256>}, {pipeline_mode = #tpu.pipeline_mode<synchronous>, transform_indices = @transform_8, window_bounds = array<i64: 1, 256>}, {transform_indices = @transform_9, window_bounds = array<i64: 2, 8, 256>}]} {
    %c0_i32 = arith.constant 0 : i32
    %0 = arith.cmpi eq, %arg0, %c0_i32 : i32
    %1 = arith.extui %0 : i1 to i32
    %c0_i32_0 = arith.constant 0 : i32
    %2 = arith.cmpi ne, %1, %c0_i32_0 : i32
    scf.if %2 {
      %cst_76 = arith.constant 0.000000e+00 : f32
      %63 = vector.broadcast %cst_76 : f32 to vector<2x18x16xf32>
      %c0_77 = arith.constant 0 : index
      %c0_78 = arith.constant 0 : index
      %c0_79 = arith.constant 0 : index
      %64 = vector.load %arg11[%c0_77, %c0_78, %c0_79] : memref<2x18x16xf32, #tpu.memory_space<vmem>>, vector<2x18x16xf32>
      tpu.vector_store %arg11[%c0_77, %c0_78, %c0_79], %63 {strides = array<i32>} : memref<2x18x16xf32, #tpu.memory_space<vmem>>, vector<2x18x16xf32>,
      %cst_80 = arith.constant 0.000000e+00 : f32
      %65 = vector.broadcast %cst_80 : f32 to vector<2x18x32xf32>
      %c0_81 = arith.constant 0 : index
      %c0_82 = arith.constant 0 : index
      %c0_83 = arith.constant 0 : index
      %66 = vector.load %arg12[%c0_81, %c0_82, %c0_83] : memref<2x18x32xf32, #tpu.memory_space<vmem>>, vector<2x18x32xf32>
      tpu.vector_store %arg12[%c0_81, %c0_82, %c0_83], %65 {strides = array<i32>} : memref<2x18x32xf32, #tpu.memory_space<vmem>>, vector<2x18x32xf32>,
      %cst_84 = arith.constant 0.000000e+00 : f32
      %67 = vector.broadcast %cst_84 : f32 to vector<2x18x64xf32>
      %c0_85 = arith.constant 0 : index
      %c0_86 = arith.constant 0 : index
      %c0_87 = arith.constant 0 : index
      %68 = vector.load %arg13[%c0_85, %c0_86, %c0_87] : memref<2x18x64xf32, #tpu.memory_space<vmem>>, vector<2x18x64xf32>
      tpu.vector_store %arg13[%c0_85, %c0_86, %c0_87], %67 {strides = array<i32>} : memref<2x18x64xf32, #tpu.memory_space<vmem>>, vector<2x18x64xf32>,
      %cst_88 = arith.constant 0.000000e+00 : f32
      %69 = vector.broadcast %cst_88 : f32 to vector<2x18x128xf32>
      %c0_89 = arith.constant 0 : index
      %c0_90 = arith.constant 0 : index
      %c0_91 = arith.constant 0 : index
      %70 = vector.load %arg14[%c0_89, %c0_90, %c0_91] : memref<2x18x128xf32, #tpu.memory_space<vmem>>, vector<2x18x128xf32>
      tpu.vector_store %arg14[%c0_89, %c0_90, %c0_91], %69 {strides = array<i32>} : memref<2x18x128xf32, #tpu.memory_space<vmem>>, vector<2x18x128xf32>,
    } else {
    }
    %c0 = arith.constant 0 : index
    %c0_1 = arith.constant 0 : index
    %c0_2 = arith.constant 0 : index
    %3 = vector.load %arg1[%c0, %c0_1, %c0_2] : memref<2x16x9xf32, #tpu.memory_space<vmem>>, vector<2x16x9xf32>
    %c0_3 = arith.constant 0 : index
    %c1 = arith.constant 1 : index
    %c0_4 = arith.constant 0 : index
    %4 = vector.load %arg11[%c0_3, %c1, %c0_4] : memref<2x18x16xf32, #tpu.memory_space<vmem>>, vector<2x16x9xf32>
    tpu.vector_store %arg11[%c0_3, %c1, %c0_4], %3 {strides = array<i32>} : memref<2x18x16xf32, #tpu.memory_space<vmem>>, vector<2x16x9xf32>,
    %c0_5 = arith.constant 0 : index
    %c0_6 = arith.constant 0 : index
    %c0_7 = arith.constant 0 : index
    %5 = vector.load %arg11[%c0_5, %c0_6, %c0_7] : memref<2x18x16xf32, #tpu.memory_space<vmem>>, vector<2x16x16xf32>
    %c0_8 = arith.constant 0 : index
    %c1_9 = arith.constant 1 : index
    %c0_10 = arith.constant 0 : index
    %6 = vector.load %arg11[%c0_8, %c1_9, %c0_10] : memref<2x18x16xf32, #tpu.memory_space<vmem>>, vector<2x16x16xf32>
    %c0_11 = arith.constant 0 : index
    %c2 = arith.constant 2 : index
    %c0_12 = arith.constant 0 : index
    %7 = vector.load %arg11[%c0_11, %c2, %c0_12] : memref<2x18x16xf32, #tpu.memory_space<vmem>>, vector<2x16x16xf32>
    %8 = tpu.concatenate %5, %6, %7 in 2 : vector<2x16x16xf32>, vector<2x16x16xf32>, vector<2x16x16xf32> -> vector<2x16x48xf32>
    %9 = vector.shape_cast %8 : vector<2x16x48xf32> to vector<32x48xf32>
    %c0_13 = arith.constant 0 : index
    %c0_14 = arith.constant 0 : index
    %10 = vector.load %arg2[%c0_13, %c0_14] : memref<48x32xf32, #tpu.memory_space<vmem>>, vector<48x32xf32>
    %cst = arith.constant dense<0.000000e+00> : vector<32x32xf32>
    %11 = tpu.matmul %9, %10, %cst {dimension_numbers = #tpu.dot_dimension_numbers<[1], [0], [0], [1], [0, 0, 1, 1], [], []>} : vector<32x48xf32>, vector<48x32xf32>, vector<32x32xf32> -> vector<32x32xf32>
    %c0_15 = arith.constant 0 : index
    %c0_16 = arith.constant 0 : index
    %12 = vector.load %arg3[%c0_15, %c0_16] : memref<1x32xf32, #tpu.memory_space<vmem>>, vector<1x32xf32>
    %13 = vector.broadcast %12 : vector<1x32xf32> to vector<32x32xf32>
    %14 = arith.addf %11, %13 : vector<32x32xf32>
    %cst_17 = arith.constant 0.000000e+00 : f32
    %15 = vector.broadcast %cst_17 : f32 to vector<32x32xf32>
    %16 = arith.maximumf %14, %15 : vector<32x32xf32>
    %17 = vector.shape_cast %16 : vector<32x32xf32> to vector<2x16x32xf32>
    %c0_18 = arith.constant 0 : index
    %c1_19 = arith.constant 1 : index
    %c0_20 = arith.constant 0 : index
    %18 = vector.load %arg12[%c0_18, %c1_19, %c0_20] : memref<2x18x32xf32, #tpu.memory_space<vmem>>, vector<2x16x32xf32>
    tpu.vector_store %arg12[%c0_18, %c1_19, %c0_20], %17 {strides = array<i32>} : memref<2x18x32xf32, #tpu.memory_space<vmem>>, vector<2x16x32xf32>,
    %c0_21 = arith.constant 0 : index
    %c0_22 = arith.constant 0 : index
    %c0_23 = arith.constant 0 : index
    %19 = vector.load %arg12[%c0_21, %c0_22, %c0_23] : memref<2x18x32xf32, #tpu.memory_space<vmem>>, vector<2x16x32xf32>
    %c0_24 = arith.constant 0 : index
    %c1_25 = arith.constant 1 : index
    %c0_26 = arith.constant 0 : index
    %20 = vector.load %arg12[%c0_24, %c1_25, %c0_26] : memref<2x18x32xf32, #tpu.memory_space<vmem>>, vector<2x16x32xf32>
    %c0_27 = arith.constant 0 : index
    %c2_28 = arith.constant 2 : index
    %c0_29 = arith.constant 0 : index
    %21 = vector.load %arg12[%c0_27, %c2_28, %c0_29] : memref<2x18x32xf32, #tpu.memory_space<vmem>>, vector<2x16x32xf32>
    %22 = tpu.concatenate %19, %20, %21 in 2 : vector<2x16x32xf32>, vector<2x16x32xf32>, vector<2x16x32xf32> -> vector<2x16x96xf32>
    %23 = vector.shape_cast %22 : vector<2x16x96xf32> to vector<32x96xf32>
    %c0_30 = arith.constant 0 : index
    %c0_31 = arith.constant 0 : index
    %24 = vector.load %arg4[%c0_30, %c0_31] : memref<96x64xf32, #tpu.memory_space<vmem>>, vector<96x64xf32>
    %cst_32 = arith.constant dense<0.000000e+00> : vector<32x64xf32>
    %25 = tpu.matmul %23, %24, %cst_32 {dimension_numbers = #tpu.dot_dimension_numbers<[1], [0], [0], [1], [0, 0, 1, 1], [], []>} : vector<32x96xf32>, vector<96x64xf32>, vector<32x64xf32> -> vector<32x64xf32>
    %c0_33 = arith.constant 0 : index
    %c0_34 = arith.constant 0 : index
    %26 = vector.load %arg5[%c0_33, %c0_34] : memref<1x64xf32, #tpu.memory_space<vmem>>, vector<1x64xf32>
    %27 = vector.broadcast %26 : vector<1x64xf32> to vector<32x64xf32>
    %28 = arith.addf %25, %27 : vector<32x64xf32>
    %cst_35 = arith.constant 0.000000e+00 : f32
    %29 = vector.broadcast %cst_35 : f32 to vector<32x64xf32>
    %30 = arith.maximumf %28, %29 : vector<32x64xf32>
    %31 = vector.shape_cast %30 : vector<32x64xf32> to vector<2x16x64xf32>
    %c0_36 = arith.constant 0 : index
    %c1_37 = arith.constant 1 : index
    %c0_38 = arith.constant 0 : index
    %32 = vector.load %arg13[%c0_36, %c1_37, %c0_38] : memref<2x18x64xf32, #tpu.memory_space<vmem>>, vector<2x16x64xf32>
    tpu.vector_store %arg13[%c0_36, %c1_37, %c0_38], %31 {strides = array<i32>} : memref<2x18x64xf32, #tpu.memory_space<vmem>>, vector<2x16x64xf32>,
    %c0_39 = arith.constant 0 : index
    %c0_40 = arith.constant 0 : index
    %c0_41 = arith.constant 0 : index
    %33 = vector.load %arg13[%c0_39, %c0_40, %c0_41] : memref<2x18x64xf32, #tpu.memory_space<vmem>>, vector<2x16x64xf32>
    %c0_42 = arith.constant 0 : index
    %c1_43 = arith.constant 1 : index
    %c0_44 = arith.constant 0 : index
    %34 = vector.load %arg13[%c0_42, %c1_43, %c0_44] : memref<2x18x64xf32, #tpu.memory_space<vmem>>, vector<2x16x64xf32>
    %c0_45 = arith.constant 0 : index
    %c2_46 = arith.constant 2 : index
    %c0_47 = arith.constant 0 : index
    %35 = vector.load %arg13[%c0_45, %c2_46, %c0_47] : memref<2x18x64xf32, #tpu.memory_space<vmem>>, vector<2x16x64xf32>
    %36 = tpu.concatenate %33, %34, %35 in 2 : vector<2x16x64xf32>, vector<2x16x64xf32>, vector<2x16x64xf32> -> vector<2x16x192xf32>
    %37 = vector.shape_cast %36 : vector<2x16x192xf32> to vector<32x192xf32>
    %c0_48 = arith.constant 0 : index
    %c0_49 = arith.constant 0 : index
    %38 = vector.load %arg6[%c0_48, %c0_49] : memref<192x128xf32, #tpu.memory_space<vmem>>, vector<192x128xf32>
    %cst_50 = arith.constant dense<0.000000e+00> : vector<32x128xf32>
    %39 = tpu.matmul %37, %38, %cst_50 {dimension_numbers = #tpu.dot_dimension_numbers<[1], [0], [0], [1], [0, 0, 1, 1], [], []>} : vector<32x192xf32>, vector<192x128xf32>, vector<32x128xf32> -> vector<32x128xf32>
    %c0_51 = arith.constant 0 : index
    %c0_52 = arith.constant 0 : index
    %40 = vector.load %arg7[%c0_51, %c0_52] : memref<1x128xf32, #tpu.memory_space<vmem>>, vector<1x128xf32>
    %41 = vector.broadcast %40 : vector<1x128xf32> to vector<32x128xf32>
    %42 = arith.addf %39, %41 : vector<32x128xf32>
    %cst_53 = arith.constant 0.000000e+00 : f32
    %43 = vector.broadcast %cst_53 : f32 to vector<32x128xf32>
    %44 = arith.maximumf %42, %43 : vector<32x128xf32>
    %45 = vector.shape_cast %44 : vector<32x128xf32> to vector<2x16x128xf32>
    %c0_54 = arith.constant 0 : index
    %c1_55 = arith.constant 1 : index
    %c0_56 = arith.constant 0 : index
    %46 = vector.load %arg14[%c0_54, %c1_55, %c0_56] : memref<2x18x128xf32, #tpu.memory_space<vmem>>, vector<2x16x128xf32>
    tpu.vector_store %arg14[%c0_54, %c1_55, %c0_56], %45 {strides = array<i32>} : memref<2x18x128xf32, #tpu.memory_space<vmem>>, vector<2x16x128xf32>,
    %c0_57 = arith.constant 0 : index
    %c0_58 = arith.constant 0 : index
    %c0_59 = arith.constant 0 : index
    %47 = vector.load %arg14[%c0_57, %c0_58, %c0_59] : memref<2x18x128xf32, #tpu.memory_space<vmem>>, vector<2x16x128xf32>
    %c0_60 = arith.constant 0 : index
    %c1_61 = arith.constant 1 : index
    %c0_62 = arith.constant 0 : index
    %48 = vector.load %arg14[%c0_60, %c1_61, %c0_62] : memref<2x18x128xf32, #tpu.memory_space<vmem>>, vector<2x16x128xf32>
    %c0_63 = arith.constant 0 : index
    %c2_64 = arith.constant 2 : index
    %c0_65 = arith.constant 0 : index
    %49 = vector.load %arg14[%c0_63, %c2_64, %c0_65] : memref<2x18x128xf32, #tpu.memory_space<vmem>>, vector<2x16x128xf32>
    %50 = tpu.concatenate %47, %48, %49 in 2 : vector<2x16x128xf32>, vector<2x16x128xf32>, vector<2x16x128xf32> -> vector<2x16x384xf32>
    %51 = vector.shape_cast %50 : vector<2x16x384xf32> to vector<32x384xf32>
    %c0_66 = arith.constant 0 : index
    %c0_67 = arith.constant 0 : index
    %52 = vector.load %arg8[%c0_66, %c0_67] : memref<384x256xf32, #tpu.memory_space<vmem>>, vector<384x256xf32>
    %cst_68 = arith.constant dense<0.000000e+00> : vector<32x256xf32>
    %53 = tpu.matmul %51, %52, %cst_68 {dimension_numbers = #tpu.dot_dimension_numbers<[1], [0], [0], [1], [0, 0, 1, 1], [], []>} : vector<32x384xf32>, vector<384x256xf32>, vector<32x256xf32> -> vector<32x256xf32>
    %c0_69 = arith.constant 0 : index
    %c0_70 = arith.constant 0 : index
    %54 = vector.load %arg9[%c0_69, %c0_70] : memref<1x256xf32, #tpu.memory_space<vmem>>, vector<1x256xf32>
    %55 = vector.broadcast %54 : vector<1x256xf32> to vector<32x256xf32>
    %56 = arith.addf %53, %55 : vector<32x256xf32>
    %cst_71 = arith.constant 0.000000e+00 : f32
    %57 = vector.broadcast %cst_71 : f32 to vector<32x256xf32>
    %58 = arith.maximumf %56, %57 : vector<32x256xf32>
    %59 = vector.shape_cast %58 : vector<32x256xf32> to vector<16x2x256xf32>
    %cst_72 = arith.constant dense<0xFF800000> : vector<16x256xf32>
    %60 = vector.multi_reduction <maximumf>, %59, %cst_72 [1] : vector<16x2x256xf32> to vector<16x256xf32>
    %61 = vector.shape_cast %60 : vector<16x256xf32> to vector<2x8x256xf32>
    %c0_73 = arith.constant 0 : index
    %c0_74 = arith.constant 0 : index
    %c0_75 = arith.constant 0 : index
    %62 = vector.load %arg10[%c0_73, %c0_74, %c0_75] : memref<2x8x256xf32, #tpu.memory_space<vmem>>, vector<2x8x256xf32>
    tpu.vector_store %arg10[%c0_73, %c0_74, %c0_75], %61 {strides = array<i32>} : memref<2x8x256xf32, #tpu.memory_space<vmem>>, vector<2x8x256xf32>,
    return
  }
  func.func @transform_0(%arg0: i32) -> (i32, i32, i32) {
    %c0_i32 = arith.constant 0 : i32
    %c0_i32_0 = arith.constant 0 : i32
    %c0_i32_1 = arith.constant 0 : i32
    return %arg0, %c0_i32, %c0_i32_0 : i32, i32, i32
  }
  func.func @transform_1(%arg0: i32) -> (i32, i32) {
    %c0_i32 = arith.constant 0 : i32
    %c0_i32_0 = arith.constant 0 : i32
    %c0_i32_1 = arith.constant 0 : i32
    return %c0_i32, %c0_i32_0 : i32, i32
  }
  func.func @transform_2(%arg0: i32) -> (i32, i32) {
    %c0_i32 = arith.constant 0 : i32
    %c0_i32_0 = arith.constant 0 : i32
    %c0_i32_1 = arith.constant 0 : i32
    return %c0_i32, %c0_i32_0 : i32, i32
  }
  func.func @transform_3(%arg0: i32) -> (i32, i32) {
    %c0_i32 = arith.constant 0 : i32
    %c0_i32_0 = arith.constant 0 : i32
    %c0_i32_1 = arith.constant 0 : i32
    return %c0_i32, %c0_i32_0 : i32, i32
  }
  func.func @transform_4(%arg0: i32) -> (i32, i32) {
    %c0_i32 = arith.constant 0 : i32
    %c0_i32_0 = arith.constant 0 : i32
    %c0_i32_1 = arith.constant 0 : i32
    return %c0_i32, %c0_i32_0 : i32, i32
  }
  func.func @transform_5(%arg0: i32) -> (i32, i32) {
    %c0_i32 = arith.constant 0 : i32
    %c0_i32_0 = arith.constant 0 : i32
    %c0_i32_1 = arith.constant 0 : i32
    return %c0_i32, %c0_i32_0 : i32, i32
  }
  func.func @transform_6(%arg0: i32) -> (i32, i32) {
    %c0_i32 = arith.constant 0 : i32
    %c0_i32_0 = arith.constant 0 : i32
    %c0_i32_1 = arith.constant 0 : i32
    return %c0_i32, %c0_i32_0 : i32, i32
  }
  func.func @transform_7(%arg0: i32) -> (i32, i32) {
    %c0_i32 = arith.constant 0 : i32
    %c0_i32_0 = arith.constant 0 : i32
    %c0_i32_1 = arith.constant 0 : i32
    return %c0_i32, %c0_i32_0 : i32, i32
  }
  func.func @transform_8(%arg0: i32) -> (i32, i32) {
    %c0_i32 = arith.constant 0 : i32
    %c0_i32_0 = arith.constant 0 : i32
    %c0_i32_1 = arith.constant 0 : i32
    return %c0_i32, %c0_i32_0 : i32, i32
  }
  func.func @transform_9(%arg0: i32) -> (i32, i32, i32) {
    %c0_i32 = arith.constant 0 : i32
    %c0_i32_0 = arith.constant 0 : i32
    %c0_i32_1 = arith.constant 0 : i32
    return %arg0, %c0_i32, %c0_i32_0 : i32, i32, i32
  }
}

</mosaic_0001>

<llo_original>
// kernel: encoder_forward.1
$region0: #{encoder_forward.1}
  #allocation0 [shape = 'u32[]', space=smem, size = 0x4, offset = 0x4, fixed_abs, tag = 'smem constant byte address 0x4 - core index']
  #allocation1 [shape = 'u32[144,128]{1,0:T(1,128)}', space=vmem, size = 0x12000, scoped, tag = 'internal scratch']
  #allocation2 [shape = 'f32[2,18,16]{2,1,0:T(8,128)}', space=vmem, size = 0x6000, scoped, tag = 'scratch operand']
  #allocation3 [shape = 'f32[2,18,32]{2,1,0:T(8,128)}', space=vmem, size = 0x6000, scoped, tag = 'scratch operand']
  #allocation4 [shape = 'f32[2,18,64]{2,1,0:T(8,128)}', space=vmem, size = 0x6000, scoped, tag = 'scratch operand']
  #allocation5 [shape = 'f32[2,18,128]{2,1,0:T(8,128)}', space=vmem, size = 0x6000, scoped, tag = 'scratch operand']
  %s0 = inlined_call_operand.vmem [shape: f32[2,16,9], index: 0, kind: input, shape index: {}]
  %s1 = inlined_call_operand.vmem [shape: f32[48,32], index: 1, kind: input, shape index: {}]
  %s2 = inlined_call_operand.vmem [shape: f32[1,32], index: 2, kind: input, shape index: {}]
  %s3 = inlined_call_operand.hbm [shape: f32[96,64], index: 3, kind: input, shape index: {}]
  %s4 = inlined_call_operand.vmem [shape: f32[1,64], index: 4, kind: input, shape index: {}]
  %s5 = inlined_call_operand.vmem [shape: f32[192,128], index: 5, kind: input, shape index: {}]
  %s6 = inlined_call_operand.vmem [shape: f32[1,128], index: 6, kind: input, shape index: {}]
  %s7 = inlined_call_operand.hbm [shape: f32[384,256], index: 7, kind: input, shape index: {}]
  %s8 = inlined_call_operand.vmem [shape: f32[1,256], index: 8, kind: input, shape index: {}]
  %s9 = inlined_call_operand.hbm [shape: f32[2,8,256], index: 9, kind: output, shape index: {}]
  %s10 = sld [smem:[#allocation0]]
  $region58: #{encoder_forward.1} parent=0
    _
  %s12 = ssub.s32 1, %s10
  %s13 = scalar_select 0, %s12, %s10
  $region1: #{encoder_forward.1} parent=0
    #allocation6 [shape = 'u8[49152]{0}', space=vmem, size = 0xc000, scoped, tag = 'input window, operand 3, single buffered']
    #allocation7 [shape = 's32[1]{0}', space=sflag, size = 0x4, scoped, tag = 'scoped memory for encoder_forward.1']
    #allocation8 [shape = 's32[1]{0}', space=sflag, size = 0x4, scoped, tag = 'scoped memory for encoder_forward.1']
    #allocation9 [shape = 'u8[393216]{0}', space=vmem, size = 0x60000, scoped, tag = 'input window, operand 7, single buffered']
    #allocation10 [shape = 's32[1]{0}', space=sflag, size = 0x4, scoped, tag = 'scoped memory for encoder_forward.1']
    #allocation11 [shape = 'u8[16384]{0}', space=vmem, size = 0x4000, scoped, tag = 'output window, operand 0, single buffered']
    %14 = vsyncpa [#allocation7], 0
    %15 = vsyncpa [#allocation10], 0
    %16 = vsyncpa [#allocation8], 0
    // Predicated region
    $region2: #{encoder_forward.1} parent=1 // pred_check
      _
    $region3: #{encoder_forward.1} parent=1 // pred_check_branch
      %18 = sbr.rel (0) target = $region5
    $region4: #{encoder_forward.1} parent=1 // pred_region
      _
    $region5: #{encoder_forward.1} parent=1 // pred_fallthru
      _
    // Predicated region
    $region6: #{encoder_forward.1} parent=1 // pred_check
      _
    $region7: #{encoder_forward.1} parent=1 // pred_check_branch
      %20 = sbr.rel (0) target = $region9
    $region8: #{encoder_forward.1} parent=1 // pred_region
      _
    $region9: #{encoder_forward.1} parent=1 // pred_fallthru
      _
    // Predicated region
    $region10: #{encoder_forward.1} parent=1 // pred_check
      _
    $region11: #{encoder_forward.1} parent=1 // pred_check_branch
      %22 = sbr.rel (0) target = $region13
    $region12: #{encoder_forward.1} parent=1 // pred_region
      _
    $region13: #{encoder_forward.1} parent=1 // pred_fallthru
      _
    // Predicated region
    $region14: #{encoder_forward.1} parent=1 // pred_check
      _
    $region15: #{encoder_forward.1} parent=1 // pred_check_branch
      %24 = sbr.rel (0) target = $region17
    $region16: #{encoder_forward.1} parent=1 // pred_region
      %s26 = ssub.s32 1536, 1536
      %27 = vsyncadd [#allocation7], %s26
      %s28 = sshll.u32 [#allocation6], 4
      %s29 = int_to_ptr.vmem [resolvable:$true] %s28
      %34 = dma.hbm_to_vmem [thread:$0]  %s3, 1536, %s29, [#allocation7], 128, 128, 8
    $region17: #{encoder_forward.1} parent=1 // pred_fallthru
      _
    // Predicated region
    $region18: #{encoder_forward.1} parent=1 // pred_check
      _
    $region19: #{encoder_forward.1} parent=1 // pred_check_branch
      %36 = sbr.rel (0) target = $region21
    $region20: #{encoder_forward.1} parent=1 // pred_region
      _
    $region21: #{encoder_forward.1} parent=1 // pred_fallthru
      _
    // Predicated region
    $region22: #{encoder_forward.1} parent=1 // pred_check
      _
    $region23: #{encoder_forward.1} parent=1 // pred_check_branch
      %38 = sbr.rel (0) target = $region25
    $region24: #{encoder_forward.1} parent=1 // pred_region
      _
    $region25: #{encoder_forward.1} parent=1 // pred_fallthru
      _
    // Predicated region
    $region26: #{encoder_forward.1} parent=1 // pred_check
      _
    $region27: #{encoder_forward.1} parent=1 // pred_check_branch
      %40 = sbr.rel (0) target = $region29
    $region28: #{encoder_forward.1} parent=1 // pred_region
      _
    $region29: #{encoder_forward.1} parent=1 // pred_fallthru
      _
    // Predicated region
    $region30: #{encoder_forward.1} parent=1 // pred_check
      _
    $region31: #{encoder_forward.1} parent=1 // pred_check_branch
      %42 = sbr.rel (0) target = $region33
    $region32: #{encoder_forward.1} parent=1 // pred_region
      %s44 = ssub.s32 12288, 12288
      %45 = vsyncadd [#allocation10], %s44
      %s46 = sshll.u32 [#allocation9], 4
      %s47 = int_to_ptr.vmem [resolvable:$true] %s46
      %52 = dma.hbm_to_vmem [thread:$0]  %s7, 12288, %s47, [#allocation10], 256, 256, 16
    $region33: #{encoder_forward.1} parent=1 // pred_fallthru
      _
    // Predicated region
    $region34: #{encoder_forward.1} parent=1 // pred_check
      _
    $region35: #{encoder_forward.1} parent=1 // pred_check_branch
      %54 = sbr.rel (0) target = $region37
    $region36: #{encoder_forward.1} parent=1 // pred_region
      _
    $region37: #{encoder_forward.1} parent=1 // pred_fallthru
      _
    // Predicated region
    $region38: #{encoder_forward.1} parent=1 // pred_check
      _
    $region39: #{encoder_forward.1} parent=1 // pred_check_branch
      %56 = sbr.rel (0) target = $region41
    $region40: #{encoder_forward.1} parent=1 // pred_region
      %57 = dma.done [#allocation7], 1536
    $region41: #{encoder_forward.1} parent=1 // pred_fallthru
      _
    // Predicated region
    $region42: #{encoder_forward.1} parent=1 // pred_check
      _
    $region43: #{encoder_forward.1} parent=1 // pred_check_branch
      %59 = sbr.rel (0) target = $region45
    $region44: #{encoder_forward.1} parent=1 // pred_region
      %60 = dma.done [#allocation10], 12288
    $region45: #{encoder_forward.1} parent=1 // pred_fallthru
      _
    %p61 = scmp.eq.s32.totalorder 0, 0
    // Predicated region
    $region46: #{encoder_forward.1} parent=1 // pred_check
      %p62 = pneg %p61
    $region47: #{encoder_forward.1} parent=1 // pred_check_branch
      %64 = sbr.rel (%p62) target = $region49
    $region48: #{encoder_forward.1} parent=1 // pred_region
      %vm65 = vcmask 130048
      %66 = vst.msk [vmem:[#allocation2] sm:$0xff] %vm65, 0.0
      %67 = vst.msk [vmem:[#allocation2 + $0x8] sm:$0xff] %vm65, 0.0
      %vm68 = vcmask 123904
      %69 = vst.msk [vmem:[#allocation2 + $0x10] sm:$0x3] %vm68, 0.0
      %70 = vst.msk [vmem:[#allocation2 + $0x18] sm:$0xff] %vm65, 0.0
      %71 = vst.msk [vmem:[#allocation2 + $0x20] sm:$0xff] %vm65, 0.0
      %72 = vst.msk [vmem:[#allocation2 + $0x28] sm:$0x3] %vm68, 0.0
      %vm73 = vcmask 261120
      %74 = vst.msk [vmem:[#allocation3] sm:$0xff] %vm73, 0.0
      %75 = vst.msk [vmem:[#allocation3 + $0x8] sm:$0xff] %vm73, 0.0
      %vm76 = vcmask 254976
      %77 = vst.msk [vmem:[#allocation3 + $0x10] sm:$0x3] %vm76, 0.0
      %78 = vst.msk [vmem:[#allocation3 + $0x18] sm:$0xff] %vm73, 0.0
      %79 = vst.msk [vmem:[#allocation3 + $0x20] sm:$0xff] %vm73, 0.0
      %80 = vst.msk [vmem:[#allocation3 + $0x28] sm:$0x3] %vm76, 0.0
      %vm81 = vcmask 523264
      %82 = vst.msk [vmem:[#allocation4] sm:$0xff] %vm81, 0.0
      %83 = vst.msk [vmem:[#allocation4 + $0x8] sm:$0xff] %vm81, 0.0
      %vm84 = vcmask 517120
      %85 = vst.msk [vmem:[#allocation4 + $0x10] sm:$0x3] %vm84, 0.0
      %86 = vst.msk [vmem:[#allocation4 + $0x18] sm:$0xff] %vm81, 0.0
      %87 = vst.msk [vmem:[#allocation4 + $0x20] sm:$0xff] %vm81, 0.0
      %88 = vst.msk [vmem:[#allocation4 + $0x28] sm:$0x3] %vm84, 0.0
      %89 = vst [vmem:[#allocation5] sm:$0xff] 0.0
      %90 = vst [vmem:[#allocation5 + $0x8] sm:$0xff] 0.0
      %91 = vst [vmem:[#allocation5 + $0x10] sm:$0x3] 0.0
      %92 = vst [vmem:[#allocation5 + $0x18] sm:$0xff] 0.0
      %93 = vst [vmem:[#allocation5 + $0x20] sm:$0xff] 0.0
      %94 = vst [vmem:[#allocation5 + $0x28] sm:$0x3] 0.0
    $region49: #{encoder_forward.1} parent=1 // pred_fallthru
      _
    %v95 = vld [vmem:[%s0] sm:$0xff]
    %v96 = vld [vmem:[%s0 + $0x8] sm:$0xff]
    %v97 = vld [vmem:[%s0 + $0x10] sm:$0xff]
    %v98 = vld [vmem:[%s0 + $0x18] sm:$0xff]
    %vm99 = vcmask 72704
    %100 = vst.msk [vmem:[#allocation2 + $0x1] sm:$0xff] %vm99, %v95
    %101 = vst.msk [vmem:[#allocation2 + $0x9] sm:$0xff] %vm99, %v96
    %102 = vst.msk [vmem:[#allocation2 + $0x19] sm:$0xff] %vm99, %v97
    %103 = vst.msk [vmem:[#allocation2 + $0x21] sm:$0xff] %vm99, %v98
    %v104 = vld [vmem:[#allocation2] sm:$0xff]
    %v105 = vld [vmem:[#allocation2 + $0x8] sm:$0xff]
    %v106 = vld [vmem:[#allocation2 + $0x18] sm:$0xff]
    %v107 = vld [vmem:[#allocation2 + $0x20] sm:$0xff]
    %v108 = vld [vmem:[#allocation2 + $0x1] sm:$0xff]
    %v109 = vld [vmem:[#allocation2 + $0x9] sm:$0xff]
    %v110 = vld [vmem:[#allocation2 + $0x19] sm:$0xff]
    %v111 = vld [vmem:[#allocation2 + $0x21] sm:$0xff]
    %v112 = vld [vmem:[#allocation2 + $0x2] sm:$0xff]
    %v113 = vld [vmem:[#allocation2 + $0xa] sm:$0xff]
    %v114 = vld [vmem:[#allocation2 + $0x1a] sm:$0xff]
    %v115 = vld [vmem:[#allocation2 + $0x22] sm:$0xff]
    %120 = vrot.lane.b32.xlu0 %v108, 16
    %v121 = vpop.permute.xlu0 %120
    %122 = vrot.lane.b32.xlu0 %v109, 16
    %v123 = vpop.permute.xlu0 %122
    %124 = vrot.lane.b32.xlu0 %v110, 16
    %v125 = vpop.permute.xlu0 %124
    %126 = vrot.lane.b32.xlu0 %v111, 16
    %v127 = vpop.permute.xlu0 %126
    %136 = vrot.lane.b32.xlu0 %v112, 32
    %v137 = vpop.permute.xlu0 %136
    %138 = vrot.lane.b32.xlu0 %v113, 32
    %v139 = vpop.permute.xlu0 %138
    %140 = vrot.lane.b32.xlu0 %v114, 32
    %v141 = vpop.permute.xlu0 %140
    %142 = vrot.lane.b32.xlu0 %v115, 32
    %v143 = vpop.permute.xlu0 %142
    %vm148 = vcmask 130048
    %v149 = vsel %vm148, %v104, %v121
    %v150 = vsel %vm148, %v105, %v123
    %v151 = vsel %vm148, %v106, %v125
    %v152 = vsel %vm148, %v107, %v127
    %vm153 = vcmask 261120
    %v154 = vsel %vm153, %v149, %v137
    %v155 = vsel %vm153, %v150, %v139
    %v156 = vsel %vm153, %v151, %v141
    %v157 = vsel %vm153, %v152, %v143
    %v158 = vld [vmem:[%s1] sm:$0xff]
    %v159 = vld [vmem:[%s1 + $0x8] sm:$0xff]
    %v160 = vld [vmem:[%s1 + $0x10] sm:$0xff]
    %v161 = vld [vmem:[%s1 + $0x18] sm:$0xff]
    %v162 = vld [vmem:[%s1 + $0x20] sm:$0xff]
    %v163 = vld [vmem:[%s1 + $0x28] sm:$0xff]
    %v164 = vld [vmem:[%s2] sm:$0x1]
    %v166 = vlaneseq
    %v167 = vshrl.u32 %v166, 7
    %v168 = vsub.s32 0, %v167
    %v169 = vrot.slane %v164, %v168
    %vm171 = vcmask 392192
    %v173 = vsel %vm171, %v154, 0
    %v176 = vsel %vm171, %v155, 0
    %v179 = vsel %vm171, %v156, 0
    %v182 = vsel %vm171, %v157, 0
    %184 = vmatprep.subr.mxu0 0.0
    %185 = vmatpush1.msra.mxu0 0.0
    %186 = vmatprep.subr.mxu0 0.0
    %187 = vmatpush1.msra.mxu0 0.0
    %188 = vmatprep.subr.mxu0 0.0
    %189 = vmatpush1.msra.mxu0 0.0
    %190 = vmatprep.subr.mxu0 0.0
    %191 = vmatpush1.msra.mxu0 0.0
    %192 = vmatprep.subr.mxu0 0.0
    %193 = vmatpush1.msra.mxu0 0.0
    %194 = vmatprep.subr.mxu0 0.0
    %195 = vmatpush1.msra.mxu0 0.0
    %196 = vmatprep.subr.mxu0 0.0
    %197 = vmatpush1.msra.mxu0 0.0
    %198 = vmatprep.subr.mxu0 0.0
    %199 = vmatpush1.msra.mxu0 0.0
    %200 = vmatprep.subr.mxu0 0.0
    %201 = vmatpush1.msra.mxu0 0.0
    %202 = vmatprep.subr.mxu0 0.0
    %203 = vmatpush1.msra.mxu0 0.0
    %204 = vmatprep.subr.mxu0 0.0
    %205 = vmatpush1.msra.mxu0 %v163
    %206 = vmatprep.subr.mxu0 0.0
    %207 = vmatpush1.msra.mxu0 %v162
    %208 = vmatprep.subr.mxu0 0.0
    %209 = vmatpush1.msra.mxu0 %v161
    %210 = vmatprep.subr.mxu0 0.0
    %211 = vmatpush1.msra.mxu0 %v160
    %212 = vmatprep.subr.mxu0 0.0
    %213 = vmatpush1.msra.mxu0 %v159
    %214 = vmatprep.subr.mxu0 0.0
    %215 = vmatpush1.msra.mxu0 %v158
    %216 = vmatprep.subr.mxu0 0.0
    %217 = vmatpush2.msra.mxu0 0.0
    %218 = vmatprep.subr.mxu0 0.0
    %219 = vmatpush2.msra.mxu0 0.0
    %220 = vmatprep.subr.mxu0 0.0
    %221 = vmatpush2.msra.mxu0 0.0
    %222 = vmatprep.subr.mxu0 0.0
    %223 = vmatpush2.msra.mxu0 0.0
    %224 = vmatprep.subr.mxu0 0.0
    %225 = vmatpush2.msra.mxu0 0.0
    %226 = vmatprep.subr.mxu0 0.0
    %227 = vmatpush2.msra.mxu0 0.0
    %228 = vmatprep.subr.mxu0 0.0
    %229 = vmatpush2.msra.mxu0 0.0
    %230 = vmatprep.subr.mxu0 0.0
    %231 = vmatpush2.msra.mxu0 0.0
    %232 = vmatprep.subr.mxu0 0.0
    %233 = vmatpush2.msra.mxu0 0.0
    %234 = vmatprep.subr.mxu0 0.0
    %235 = vmatpush2.msra.mxu0 0.0
    %236 = vmatprep.subr.mxu0 0.0
    %237 = vmatpush2.msra.mxu0 0.0
    %238 = vmatprep.subr.mxu0 0.0
    %239 = vmatpush2.msra.mxu0 0.0
    %240 = vmatprep.subr.mxu0 0.0
    %241 = vmatpush2.msra.mxu0 0.0
    %242 = vmatprep.subr.mxu0 0.0
    %243 = vmatpush2.msra.mxu0 0.0
    %244 = vmatprep.subr.mxu0 0.0
    %245 = vmatpush2.msra.mxu0 0.0
    %246 = vmatprep.subr.mxu0 0.0
    %247 = vmatpush2.msra.mxu0 0.0
    %248 = vmatprep.mubr.f32.mxu0 0.0
    %249 = vmatmul.mubr.f32.gmra.mxu0 %v173
    %v250 = vpop.f32.mrf.mxu0
    %v251 = vadd.f32 %v169, %v250
    %v252 = vpop.f32.mrf.mxu0
    %253 = vmatprep.mubr.f32.mxu0 0.0
    %254 = vmatmul.mubr.f32.gmra.mxu0 %v176
    %v255 = vpop.f32.mrf.mxu0
    %v256 = vadd.f32 %v169, %v255
    %v257 = vpop.f32.mrf.mxu0
    %258 = vmatprep.mubr.f32.mxu0 0.0
    %259 = vmatmul.mubr.f32.gmra.mxu0 %v179
    %v260 = vpop.f32.mrf.mxu0
    %v261 = vadd.f32 %v169, %v260
    %v262 = vpop.f32.mrf.mxu0
    %263 = vmatprep.mubr.f32.mxu0 0.0
    %264 = vmatmul.mubr.f32.gmra.mxu0 %v182
    %v265 = vpop.f32.mrf.mxu0
    %v266 = vadd.f32 %v169, %v265
    %v267 = vpop.f32.mrf.mxu0
    %268 = vdwg.mxu0
    %v269 = vmax.f32 %v251, 0.0
    %v270 = vmax.f32 %v256, 0.0
    %v271 = vmax.f32 %v261, 0.0
    %v272 = vmax.f32 %v266, 0.0
    %273 = vst.msk [vmem:[#allocation3 + $0x1] sm:$0xff] %vm153, %v269
    %274 = vst.msk [vmem:[#allocation3 + $0x9] sm:$0xff] %vm153, %v270
    %275 = vst.msk [vmem:[#allocation3 + $0x19] sm:$0xff] %vm153, %v271
    %276 = vst.msk [vmem:[#allocation3 + $0x21] sm:$0xff] %vm153, %v272
    %v277 = vld [vmem:[#allocation3] sm:$0xff]
    %v278 = vld [vmem:[#allocation3 + $0x8] sm:$0xff]
    %v279 = vld [vmem:[#allocation3 + $0x18] sm:$0xff]
    %v280 = vld [vmem:[#allocation3 + $0x20] sm:$0xff]
    %v281 = vld [vmem:[#allocation3 + $0x1] sm:$0xff]
    %v282 = vld [vmem:[#allocation3 + $0x9] sm:$0xff]
    %v283 = vld [vmem:[#allocation3 + $0x19] sm:$0xff]
    %v284 = vld [vmem:[#allocation3 + $0x21] sm:$0xff]
    %v285 = vld [vmem:[#allocation3 + $0x2] sm:$0xff]
    %v286 = vld [vmem:[#allocation3 + $0xa] sm:$0xff]
    %v287 = vld [vmem:[#allocation3 + $0x1a] sm:$0xff]
    %v288 = vld [vmem:[#allocation3 + $0x22] sm:$0xff]
    %293 = vrot.lane.b32.xlu0 %v281, 32
    %v294 = vpop.permute.xlu0 %293
    %295 = vrot.lane.b32.xlu0 %v282, 32
    %v296 = vpop.permute.xlu0 %295
    %297 = vrot.lane.b32.xlu0 %v283, 32
    %v298 = vpop.permute.xlu0 %297
    %299 = vrot.lane.b32.xlu0 %v284, 32
    %v300 = vpop.permute.xlu0 %299
    %309 = vrot.lane.b32.xlu0 %v285, 64
    %v310 = vpop.permute.xlu0 %309
    %311 = vrot.lane.b32.xlu0 %v286, 64
    %v312 = vpop.permute.xlu0 %311
    %313 = vrot.lane.b32.xlu0 %v287, 64
    %v314 = vpop.permute.xlu0 %313
    %315 = vrot.lane.b32.xlu0 %v288, 64
    %v316 = vpop.permute.xlu0 %315
    %v321 = vsel %vm153, %v277, %v294
    %v322 = vsel %vm153, %v278, %v296
    %v323 = vsel %vm153, %v279, %v298
    %v324 = vsel %vm153, %v280, %v300
    %vm325 = vcmask 523264
    %v326 = vsel %vm325, %v321, %v310
    %v327 = vsel %vm325, %v322, %v312
    %v328 = vsel %vm325, %v323, %v314
    %v329 = vsel %vm325, %v324, %v316
    %v330 = vld [vmem:[#allocation6] sm:$0xff]
    %v331 = vld [vmem:[#allocation6 + $0x8] sm:$0xff]
    %v332 = vld [vmem:[#allocation6 + $0x10] sm:$0xff]
    %v333 = vld [vmem:[#allocation6 + $0x18] sm:$0xff]
    %v334 = vld [vmem:[#allocation6 + $0x20] sm:$0xff]
    %v335 = vld [vmem:[#allocation6 + $0x28] sm:$0xff]
    %v336 = vld [vmem:[#allocation6 + $0x30] sm:$0xff]
    %v337 = vld [vmem:[#allocation6 + $0x38] sm:$0xff]
    %v338 = vld [vmem:[#allocation6 + $0x40] sm:$0xff]
    %v339 = vld [vmem:[#allocation6 + $0x48] sm:$0xff]
    %v340 = vld [vmem:[#allocation6 + $0x50] sm:$0xff]
    %v341 = vld [vmem:[#allocation6 + $0x58] sm:$0xff]
    %v342 = vld [vmem:[%s4] sm:$0x1]
    %v344 = vlaneseq
    %v345 = vshrl.u32 %v344, 7
    %v346 = vsub.s32 0, %v345
    %v347 = vrot.slane %v342, %v346
    %vm349 = vcmask 785408
    %v351 = vsel %vm349, %v326, 0
    %v354 = vsel %vm349, %v327, 0
    %v357 = vsel %vm349, %v328, 0
    %v360 = vsel %vm349, %v329, 0
    %362 = vmatprep.subr.mxu0 0.0
    %363 = vmatpush1.msra.mxu0 0.0
    %364 = vmatprep.subr.mxu0 0.0
    %365 = vmatpush1.msra.mxu0 0.0
    %366 = vmatprep.subr.mxu0 0.0
    %367 = vmatpush1.msra.mxu0 0.0
    %368 = vmatprep.subr.mxu0 0.0
    %369 = vmatpush1.msra.mxu0 0.0
    %370 = vmatprep.subr.mxu0 0.0
    %371 = vmatpush1.msra.mxu0 %v341
    %372 = vmatprep.subr.mxu0 0.0
    %373 = vmatpush1.msra.mxu0 %v340
    %374 = vmatprep.subr.mxu0 0.0
    %375 = vmatpush1.msra.mxu0 %v339
    %376 = vmatprep.subr.mxu0 0.0
    %377 = vmatpush1.msra.mxu0 %v338
    %378 = vmatprep.subr.mxu0 0.0
    %379 = vmatpush1.msra.mxu0 %v337
    %380 = vmatprep.subr.mxu0 0.0
    %381 = vmatpush1.msra.mxu0 %v336
    %382 = vmatprep.subr.mxu0 0.0
    %383 = vmatpush1.msra.mxu0 %v335
    %384 = vmatprep.subr.mxu0 0.0
    %385 = vmatpush1.msra.mxu0 %v334
    %386 = vmatprep.subr.mxu0 0.0
    %387 = vmatpush1.msra.mxu0 %v333
    %388 = vmatprep.subr.mxu0 0.0
    %389 = vmatpush1.msra.mxu0 %v332
    %390 = vmatprep.subr.mxu0 0.0
    %391 = vmatpush1.msra.mxu0 %v331
    %392 = vmatprep.subr.mxu0 0.0
    %393 = vmatpush1.msra.mxu0 %v330
    %394 = vmatprep.subr.mxu0 0.0
    %395 = vmatpush2.msra.mxu0 0.0
    %396 = vmatprep.subr.mxu0 0.0
    %397 = vmatpush2.msra.mxu0 0.0
    %398 = vmatprep.subr.mxu0 0.0
    %399 = vmatpush2.msra.mxu0 0.0
    %400 = vmatprep.subr.mxu0 0.0
    %401 = vmatpush2.msra.mxu0 0.0
    %402 = vmatprep.subr.mxu0 0.0
    %403 = vmatpush2.msra.mxu0 0.0
    %404 = vmatprep.subr.mxu0 0.0
    %405 = vmatpush2.msra.mxu0 0.0
    %406 = vmatprep.subr.mxu0 0.0
    %407 = vmatpush2.msra.mxu0 0.0
    %408 = vmatprep.subr.mxu0 0.0
    %409 = vmatpush2.msra.mxu0 0.0
    %410 = vmatprep.subr.mxu0 0.0
    %411 = vmatpush2.msra.mxu0 0.0
    %412 = vmatprep.subr.mxu0 0.0
    %413 = vmatpush2.msra.mxu0 0.0
    %414 = vmatprep.subr.mxu0 0.0
    %415 = vmatpush2.msra.mxu0 0.0
    %416 = vmatprep.subr.mxu0 0.0
    %417 = vmatpush2.msra.mxu0 0.0
    %418 = vmatprep.subr.mxu0 0.0
    %419 = vmatpush2.msra.mxu0 0.0
    %420 = vmatprep.subr.mxu0 0.0
    %421 = vmatpush2.msra.mxu0 0.0
    %422 = vmatprep.subr.mxu0 0.0
    %423 = vmatpush2.msra.mxu0 0.0
    %424 = vmatprep.subr.mxu0 0.0
    %425 = vmatpush2.msra.mxu0 0.0
    %426 = vmatprep.mubr.f32.mxu0 0.0
    %427 = vmatmul.mubr.f32.gmra.mxu0 %v351
    %v428 = vpop.f32.mrf.mxu0
    %v429 = vadd.f32 %v347, %v428
    %v430 = vpop.f32.mrf.mxu0
    %431 = vmatprep.mubr.f32.mxu0 0.0
    %432 = vmatmul.mubr.f32.gmra.mxu0 %v354
    %v433 = vpop.f32.mrf.mxu0
    %v434 = vadd.f32 %v347, %v433
    %v435 = vpop.f32.mrf.mxu0
    %436 = vmatprep.mubr.f32.mxu0 0.0
    %437 = vmatmul.mubr.f32.gmra.mxu0 %v357
    %v438 = vpop.f32.mrf.mxu0
    %v439 = vadd.f32 %v347, %v438
    %v440 = vpop.f32.mrf.mxu0
    %441 = vmatprep.mubr.f32.mxu0 0.0
    %442 = vmatmul.mubr.f32.gmra.mxu0 %v360
    %v443 = vpop.f32.mrf.mxu0
    %v444 = vadd.f32 %v347, %v443
    %v445 = vpop.f32.mrf.mxu0
    %446 = vdwg.mxu0
    %v447 = vmax.f32 %v429, 0.0
    %v448 = vmax.f32 %v434, 0.0
    %v449 = vmax.f32 %v439, 0.0
    %v450 = vmax.f32 %v444, 0.0
    %451 = vst.msk [vmem:[#allocation4 + $0x1] sm:$0xff] %vm325, %v447
    %452 = vst.msk [vmem:[#allocation4 + $0x9] sm:$0xff] %vm325, %v448
    %453 = vst.msk [vmem:[#allocation4 + $0x19] sm:$0xff] %vm325, %v449
    %454 = vst.msk [vmem:[#allocation4 + $0x21] sm:$0xff] %vm325, %v450
    %v455 = vld [vmem:[#allocation4] sm:$0xff]
    %v456 = vld [vmem:[#allocation4 + $0x8] sm:$0xff]
    %v457 = vld [vmem:[#allocation4 + $0x18] sm:$0xff]
    %v458 = vld [vmem:[#allocation4 + $0x20] sm:$0xff]
    %v459 = vld [vmem:[#allocation4 + $0x1] sm:$0xff]
    %v460 = vld [vmem:[#allocation4 + $0x9] sm:$0xff]
    %v461 = vld [vmem:[#allocation4 + $0x19] sm:$0xff]
    %v462 = vld [vmem:[#allocation4 + $0x21] sm:$0xff]
    %v463 = vld [vmem:[#allocation4 + $0x2] sm:$0xff]
    %v464 = vld [vmem:[#allocation4 + $0xa] sm:$0xff]
    %v465 = vld [vmem:[#allocation4 + $0x1a] sm:$0xff]
    %v466 = vld [vmem:[#allocation4 + $0x22] sm:$0xff]
    %471 = vrot.lane.b32.xlu0 %v459, 64
    %v472 = vpop.permute.xlu0 %471
    %473 = vrot.lane.b32.xlu0 %v460, 64
    %v474 = vpop.permute.xlu0 %473
    %475 = vrot.lane.b32.xlu0 %v461, 64
    %v476 = vpop.permute.xlu0 %475
    %477 = vrot.lane.b32.xlu0 %v462, 64
    %v478 = vpop.permute.xlu0 %477
    %v483 = vsel %vm325, %v455, %v472
    %v484 = vsel %vm325, %v456, %v474
    %v485 = vsel %vm325, %v457, %v476
    %v486 = vsel %vm325, %v458, %v478
    %v487 = vld [vmem:[%s5] sm:$0xff]
    %v488 = vld [vmem:[%s5 + $0x8] sm:$0xff]
    %v489 = vld [vmem:[%s5 + $0x10] sm:$0xff]
    %v490 = vld [vmem:[%s5 + $0x18] sm:$0xff]
    %v491 = vld [vmem:[%s5 + $0x20] sm:$0xff]
    %v492 = vld [vmem:[%s5 + $0x28] sm:$0xff]
    %v493 = vld [vmem:[%s5 + $0x30] sm:$0xff]
    %v494 = vld [vmem:[%s5 + $0x38] sm:$0xff]
    %v495 = vld [vmem:[%s5 + $0x40] sm:$0xff]
    %v496 = vld [vmem:[%s5 + $0x48] sm:$0xff]
    %v497 = vld [vmem:[%s5 + $0x50] sm:$0xff]
    %v498 = vld [vmem:[%s5 + $0x58] sm:$0xff]
    %v499 = vld [vmem:[%s5 + $0x60] sm:$0xff]
    %v500 = vld [vmem:[%s5 + $0x68] sm:$0xff]
    %v501 = vld [vmem:[%s5 + $0x70] sm:$0xff]
    %v502 = vld [vmem:[%s5 + $0x78] sm:$0xff]
    %v503 = vld [vmem:[%s5 + $0x80] sm:$0xff]
    %v504 = vld [vmem:[%s5 + $0x88] sm:$0xff]
    %v505 = vld [vmem:[%s5 + $0x90] sm:$0xff]
    %v506 = vld [vmem:[%s5 + $0x98] sm:$0xff]
    %v507 = vld [vmem:[%s5 + $0xa0] sm:$0xff]
    %v508 = vld [vmem:[%s5 + $0xa8] sm:$0xff]
    %v509 = vld [vmem:[%s5 + $0xb0] sm:$0xff]
    %v510 = vld [vmem:[%s5 + $0xb8] sm:$0xff]
    %v511 = vld [vmem:[%s6] sm:$0x1]
    %v513 = vlaneseq
    %v514 = vshrl.u32 %v513, 7
    %v515 = vsub.s32 0, %v514
    %v516 = vrot.slane %v511, %v515
    %v519 = vsel %vm325, %v463, 0
    %v522 = vsel %vm325, %v464, 0
    %v525 = vsel %vm325, %v465, 0
    %v528 = vsel %vm325, %v466, 0
    %530 = vmatprep.subr.mxu0 0.0
    %531 = vmatpush1.msra.mxu0 %v502
    %532 = vmatprep.subr.mxu0 0.0
    %533 = vmatpush1.msra.mxu0 %v501
    %534 = vmatprep.subr.mxu0 0.0
    %535 = vmatpush1.msra.mxu0 %v500
    %536 = vmatprep.subr.mxu0 0.0
    %537 = vmatpush1.msra.mxu0 %v499
    %538 = vmatprep.subr.mxu0 0.0
    %539 = vmatpush1.msra.mxu0 %v498
    %540 = vmatprep.subr.mxu0 0.0
    %541 = vmatpush1.msra.mxu0 %v497
    %542 = vmatprep.subr.mxu0 0.0
    %543 = vmatpush1.msra.mxu0 %v496
    %544 = vmatprep.subr.mxu0 0.0
    %545 = vmatpush1.msra.mxu0 %v495
    %546 = vmatprep.subr.mxu0 0.0
    %547 = vmatpush1.msra.mxu0 %v494
    %548 = vmatprep.subr.mxu0 0.0
    %549 = vmatpush1.msra.mxu0 %v493
    %550 = vmatprep.subr.mxu0 0.0
    %551 = vmatpush1.msra.mxu0 %v492
    %552 = vmatprep.subr.mxu0 0.0
    %553 = vmatpush1.msra.mxu0 %v491
    %554 = vmatprep.subr.mxu0 0.0
    %555 = vmatpush1.msra.mxu0 %v490
    %556 = vmatprep.subr.mxu0 0.0
    %557 = vmatpush1.msra.mxu0 %v489
    %558 = vmatprep.subr.mxu0 0.0
    %559 = vmatpush1.msra.mxu0 %v488
    %560 = vmatprep.subr.mxu0 0.0
    %561 = vmatpush1.msra.mxu0 %v487
    %562 = vmatprep.subr.mxu0 0.0
    %563 = vmatpush2.msra.mxu0 0.0
    %564 = vmatprep.subr.mxu0 0.0
    %565 = vmatpush2.msra.mxu0 0.0
    %566 = vmatprep.subr.mxu0 0.0
    %567 = vmatpush2.msra.mxu0 0.0
    %568 = vmatprep.subr.mxu0 0.0
    %569 = vmatpush2.msra.mxu0 0.0
    %570 = vmatprep.subr.mxu0 0.0
    %571 = vmatpush2.msra.mxu0 0.0
    %572 = vmatprep.subr.mxu0 0.0
    %573 = vmatpush2.msra.mxu0 0.0
    %574 = vmatprep.subr.mxu0 0.0
    %575 = vmatpush2.msra.mxu0 0.0
    %576 = vmatprep.subr.mxu0 0.0
    %577 = vmatpush2.msra.mxu0 0.0
    %578 = vmatprep.subr.mxu0 0.0
    %579 = vmatpush2.msra.mxu0 %v510
    %580 = vmatprep.subr.mxu0 0.0
    %581 = vmatpush2.msra.mxu0 %v509
    %582 = vmatprep.subr.mxu0 0.0
    %583 = vmatpush2.msra.mxu0 %v508
    %584 = vmatprep.subr.mxu0 0.0
    %585 = vmatpush2.msra.mxu0 %v507
    %586 = vmatprep.subr.mxu0 0.0
    %587 = vmatpush2.msra.mxu0 %v506
    %588 = vmatprep.subr.mxu0 0.0
    %589 = vmatpush2.msra.mxu0 %v505
    %590 = vmatprep.subr.mxu0 0.0
    %591 = vmatpush2.msra.mxu0 %v504
    %592 = vmatprep.subr.mxu0 0.0
    %593 = vmatpush2.msra.mxu0 %v503
    %594 = vmatprep.mubr.f32.mxu0 %v519
    %595 = vmatmul.mubr.f32.gmra.mxu0 %v483
    %v596 = vpop.f32.mrf.mxu0
    %v597 = vadd.f32 %v516, %v596
    %v598 = vpop.f32.mrf.mxu0
    %599 = vmatprep.mubr.f32.mxu0 %v522
    %600 = vmatmul.mubr.f32.gmra.mxu0 %v484
    %v601 = vpop.f32.mrf.mxu0
    %v602 = vadd.f32 %v516, %v601
    %v603 = vpop.f32.mrf.mxu0
    %604 = vmatprep.mubr.f32.mxu0 %v525
    %605 = vmatmul.mubr.f32.gmra.mxu0 %v485
    %v606 = vpop.f32.mrf.mxu0
    %v607 = vadd.f32 %v516, %v606
    %v608 = vpop.f32.mrf.mxu0
    %609 = vmatprep.mubr.f32.mxu0 %v528
    %610 = vmatmul.mubr.f32.gmra.mxu0 %v486
    %v611 = vpop.f32.mrf.mxu0
    %v612 = vadd.f32 %v516, %v611
    %v613 = vpop.f32.mrf.mxu0
    %614 = vdwg.mxu0
    %v615 = vmax.f32 %v597, 0.0
    %v616 = vmax.f32 %v602, 0.0
    %v617 = vmax.f32 %v607, 0.0
    %v618 = vmax.f32 %v612, 0.0
    %619 = vst [vmem:[#allocation5 + $0x1] sm:$0xff] %v615
    %620 = vst [vmem:[#allocation5 + $0x9] sm:$0xff] %v616
    %621 = vst [vmem:[#allocation5 + $0x19] sm:$0xff] %v617
    %622 = vst [vmem:[#allocation5 + $0x21] sm:$0xff] %v618
    %v623 = vld [vmem:[#allocation5] sm:$0xff]
    %v624 = vld [vmem:[#allocation5 + $0x8] sm:$0xff]
    %v625 = vld [vmem:[#allocation5 + $0x18] sm:$0xff]
    %v626 = vld [vmem:[#allocation5 + $0x20] sm:$0xff]
    %v627 = vld [vmem:[#allocation5 + $0x1] sm:$0xff]
    %v628 = vld [vmem:[#allocation5 + $0x9] sm:$0xff]
    %v629 = vld [vmem:[#allocation5 + $0x19] sm:$0xff]
    %v630 = vld [vmem:[#allocation5 + $0x21] sm:$0xff]
    %v631 = vld [vmem:[#allocation5 + $0x2] sm:$0xff]
    %v632 = vld [vmem:[#allocation5 + $0xa] sm:$0xff]
    %v633 = vld [vmem:[#allocation5 + $0x1a] sm:$0xff]
    %v634 = vld [vmem:[#allocation5 + $0x22] sm:$0xff]
    %v635 = vld [vmem:[#allocation9] sm:$0xff]
    %v636 = vld [vmem:[#allocation9 + $0x8] sm:$0xff]
    %v637 = vld [vmem:[#allocation9 + $0x10] sm:$0xff]
    %v638 = vld [vmem:[#allocation9 + $0x18] sm:$0xff]
    %v639 = vld [vmem:[#allocation9 + $0x20] sm:$0xff]
    %v640 = vld [vmem:[#allocation9 + $0x28] sm:$0xff]
    %v641 = vld [vmem:[#allocation9 + $0x30] sm:$0xff]
    %v642 = vld [vmem:[#allocation9 + $0x38] sm:$0xff]
    %v643 = vld [vmem:[#allocation9 + $0x40] sm:$0xff]
    %v644 = vld [vmem:[#allocation9 + $0x48] sm:$0xff]
    %v645 = vld [vmem:[#allocation9 + $0x50] sm:$0xff]
    %v646 = vld [vmem:[#allocation9 + $0x58] sm:$0xff]
    %v647 = vld [vmem:[#allocation9 + $0x60] sm:$0xff]
    %v648 = vld [vmem:[#allocation9 + $0x68] sm:$0xff]
    %v649 = vld [vmem:[#allocation9 + $0x70] sm:$0xff]
    %v650 = vld [vmem:[#allocation9 + $0x78] sm:$0xff]
    %v651 = vld [vmem:[#allocation9 + $0x80] sm:$0xff]
    %v652 = vld [vmem:[#allocation9 + $0x88] sm:$0xff]
    %v653 = vld [vmem:[#allocation9 + $0x90] sm:$0xff]
    %v654 = vld [vmem:[#allocation9 + $0x98] sm:$0xff]
    %v655 = vld [vmem:[#allocation9 + $0xa0] sm:$0xff]
    %v656 = vld [vmem:[#allocation9 + $0xa8] sm:$0xff]
    %v657 = vld [vmem:[#allocation9 + $0xb0] sm:$0xff]
    %v658 = vld [vmem:[#allocation9 + $0xb8] sm:$0xff]
    %v659 = vld [vmem:[#allocation9 + $0xc0] sm:$0xff]
    %v660 = vld [vmem:[#allocation9 + $0xc8] sm:$0xff]
    %v661 = vld [vmem:[#allocation9 + $0xd0] sm:$0xff]
    %v662 = vld [vmem:[#allocation9 + $0xd8] sm:$0xff]
    %v663 = vld [vmem:[#allocation9 + $0xe0] sm:$0xff]
    %v664 = vld [vmem:[#allocation9 + $0xe8] sm:$0xff]
    %v665 = vld [vmem:[#allocation9 + $0xf0] sm:$0xff]
    %v666 = vld [vmem:[#allocation9 + $0xf8] sm:$0xff]
    %v667 = vld [vmem:[#allocation9 + $0x100] sm:$0xff]
    %v668 = vld [vmem:[#allocation9 + $0x108] sm:$0xff]
    %v669 = vld [vmem:[#allocation9 + $0x110] sm:$0xff]
    %v670 = vld [vmem:[#allocation9 + $0x118] sm:$0xff]
    %v671 = vld [vmem:[#allocation9 + $0x120] sm:$0xff]
    %v672 = vld [vmem:[#allocation9 + $0x128] sm:$0xff]
    %v673 = vld [vmem:[#allocation9 + $0x130] sm:$0xff]
    %v674 = vld [vmem:[#allocation9 + $0x138] sm:$0xff]
    %v675 = vld [vmem:[#allocation9 + $0x140] sm:$0xff]
    %v676 = vld [vmem:[#allocation9 + $0x148] sm:$0xff]
    %v677 = vld [vmem:[#allocation9 + $0x150] sm:$0xff]
    %v678 = vld [vmem:[#allocation9 + $0x158] sm:$0xff]
    %v679 = vld [vmem:[#allocation9 + $0x160] sm:$0xff]
    %v680 = vld [vmem:[#allocation9 + $0x168] sm:$0xff]
    %v681 = vld [vmem:[#allocation9 + $0x170] sm:$0xff]
    %v682 = vld [vmem:[#allocation9 + $0x178] sm:$0xff]
    %v683 = vld [vmem:[#allocation9 + $0x180] sm:$0xff]
    %v684 = vld [vmem:[#allocation9 + $0x188] sm:$0xff]
    %v685 = vld [vmem:[#allocation9 + $0x190] sm:$0xff]
    %v686 = vld [vmem:[#allocation9 + $0x198] sm:$0xff]
    %v687 = vld [vmem:[#allocation9 + $0x1a0] sm:$0xff]
    %v688 = vld [vmem:[#allocation9 + $0x1a8] sm:$0xff]
    %v689 = vld [vmem:[#allocation9 + $0x1b0] sm:$0xff]
    %v690 = vld [vmem:[#allocation9 + $0x1b8] sm:$0xff]
    %v691 = vld [vmem:[#allocation9 + $0x1c0] sm:$0xff]
    %v692 = vld [vmem:[#allocation9 + $0x1c8] sm:$0xff]
    %v693 = vld [vmem:[#allocation9 + $0x1d0] sm:$0xff]
    %v694 = vld [vmem:[#allocation9 + $0x1d8] sm:$0xff]
    %v695 = vld [vmem:[#allocation9 + $0x1e0] sm:$0xff]
    %v696 = vld [vmem:[#allocation9 + $0x1e8] sm:$0xff]
    %v697 = vld [vmem:[#allocation9 + $0x1f0] sm:$0xff]
    %v698 = vld [vmem:[#allocation9 + $0x1f8] sm:$0xff]
    %v699 = vld [vmem:[#allocation9 + $0x200] sm:$0xff]
    %v700 = vld [vmem:[#allocation9 + $0x208] sm:$0xff]
    %v701 = vld [vmem:[#allocation9 + $0x210] sm:$0xff]
    %v702 = vld [vmem:[#allocation9 + $0x218] sm:$0xff]
    %v703 = vld [vmem:[#allocation9 + $0x220] sm:$0xff]
    %v704 = vld [vmem:[#allocation9 + $0x228] sm:$0xff]
    %v705 = vld [vmem:[#allocation9 + $0x230] sm:$0xff]
    %v706 = vld [vmem:[#allocation9 + $0x238] sm:$0xff]
    %v707 = vld [vmem:[#allocation9 + $0x240] sm:$0xff]
    %v708 = vld [vmem:[#allocation9 + $0x248] sm:$0xff]
    %v709 = vld [vmem:[#allocation9 + $0x250] sm:$0xff]
    %v710 = vld [vmem:[#allocation9 + $0x258] sm:$0xff]
    %v711 = vld [vmem:[#allocation9 + $0x260] sm:$0xff]
    %v712 = vld [vmem:[#allocation9 + $0x268] sm:$0xff]
    %v713 = vld [vmem:[#allocation9 + $0x270] sm:$0xff]
    %v714 = vld [vmem:[#allocation9 + $0x278] sm:$0xff]
    %v715 = vld [vmem:[#allocation9 + $0x280] sm:$0xff]
    %v716 = vld [vmem:[#allocation9 + $0x288] sm:$0xff]
    %v717 = vld [vmem:[#allocation9 + $0x290] sm:$0xff]
    %v718 = vld [vmem:[#allocation9 + $0x298] sm:$0xff]
    %v719 = vld [vmem:[#allocation9 + $0x2a0] sm:$0xff]
    %v720 = vld [vmem:[#allocation9 + $0x2a8] sm:$0xff]
    %v721 = vld [vmem:[#allocation9 + $0x2b0] sm:$0xff]
    %v722 = vld [vmem:[#allocation9 + $0x2b8] sm:$0xff]
    %v723 = vld [vmem:[#allocation9 + $0x2c0] sm:$0xff]
    %v724 = vld [vmem:[#allocation9 + $0x2c8] sm:$0xff]
    %v725 = vld [vmem:[#allocation9 + $0x2d0] sm:$0xff]
    %v726 = vld [vmem:[#allocation9 + $0x2d8] sm:$0xff]
    %v727 = vld [vmem:[#allocation9 + $0x2e0] sm:$0xff]
    %v728 = vld [vmem:[#allocation9 + $0x2e8] sm:$0xff]
    %v729 = vld [vmem:[#allocation9 + $0x2f0] sm:$0xff]
    %v730 = vld [vmem:[#allocation9 + $0x2f8] sm:$0xff]
    %v731 = vld [vmem:[%s8] sm:$0x3]
    %v733 = vlaneseq
    %v734 = vshrl.u32 %v733, 7
    %v735 = vsub.s32 0, %v734
    %v736 = vrot.slane %v731, %v735
    %v737 = vlaneseq
    %v738 = vshrl.u32 %v737, 7
    %v739 = vsub.s32 1, %v738
    %v740 = vrot.slane %v731, %v739
    %743 = vmatprep.subr.mxu0 %v666
    %744 = vmatpush1.msra.mxu0 %v665
    %745 = vmatprep.subr.mxu0 %v664
    %746 = vmatpush1.msra.mxu0 %v663
    %747 = vmatprep.subr.mxu0 %v662
    %748 = vmatpush1.msra.mxu0 %v661
    %749 = vmatprep.subr.mxu0 %v660
    %750 = vmatpush1.msra.mxu0 %v659
    %751 = vmatprep.subr.mxu0 %v658
    %752 = vmatpush1.msra.mxu0 %v657
    %753 = vmatprep.subr.mxu0 %v656
    %754 = vmatpush1.msra.mxu0 %v655
    %755 = vmatprep.subr.mxu0 %v654
    %756 = vmatpush1.msra.mxu0 %v653
    %757 = vmatprep.subr.mxu0 %v652
    %758 = vmatpush1.msra.mxu0 %v651
    %759 = vmatprep.subr.mxu0 %v650
    %760 = vmatpush1.msra.mxu0 %v649
    %761 = vmatprep.subr.mxu0 %v648
    %762 = vmatpush1.msra.mxu0 %v647
    %763 = vmatprep.subr.mxu0 %v646
    %764 = vmatpush1.msra.mxu0 %v645
    %765 = vmatprep.subr.mxu0 %v644
    %766 = vmatpush1.msra.mxu0 %v643
    %767 = vmatprep.subr.mxu0 %v642
    %768 = vmatpush1.msra.mxu0 %v641
    %769 = vmatprep.subr.mxu0 %v640
    %770 = vmatpush1.msra.mxu0 %v639
    %771 = vmatprep.subr.mxu0 %v638
    %772 = vmatpush1.msra.mxu0 %v637
    %773 = vmatprep.subr.mxu0 %v636
    %774 = vmatpush1.msra.mxu0 %v635
    %775 = vmatprep.subr.mxu0 %v698
    %776 = vmatpush2.msra.mxu0 %v697
    %777 = vmatprep.subr.mxu0 %v696
    %778 = vmatpush2.msra.mxu0 %v695
    %779 = vmatprep.subr.mxu0 %v694
    %780 = vmatpush2.msra.mxu0 %v693
    %781 = vmatprep.subr.mxu0 %v692
    %782 = vmatpush2.msra.mxu0 %v691
    %783 = vmatprep.subr.mxu0 %v690
    %784 = vmatpush2.msra.mxu0 %v689
    %785 = vmatprep.subr.mxu0 %v688
    %786 = vmatpush2.msra.mxu0 %v687
    %787 = vmatprep.subr.mxu0 %v686
    %788 = vmatpush2.msra.mxu0 %v685
    %789 = vmatprep.subr.mxu0 %v684
    %790 = vmatpush2.msra.mxu0 %v683
    %791 = vmatprep.subr.mxu0 %v682
    %792 = vmatpush2.msra.mxu0 %v681
    %793 = vmatprep.subr.mxu0 %v680
    %794 = vmatpush2.msra.mxu0 %v679
    %795 = vmatprep.subr.mxu0 %v678
    %796 = vmatpush2.msra.mxu0 %v677
    %797 = vmatprep.subr.mxu0 %v676
    %798 = vmatpush2.msra.mxu0 %v675
    %799 = vmatprep.subr.mxu0 %v674
    %800 = vmatpush2.msra.mxu0 %v673
    %801 = vmatprep.subr.mxu0 %v672
    %802 = vmatpush2.msra.mxu0 %v671
    %803 = vmatprep.subr.mxu0 %v670
    %804 = vmatpush2.msra.mxu0 %v669
    %805 = vmatprep.subr.mxu0 %v668
    %806 = vmatpush2.msra.mxu0 %v667
    %807 = vmatprep.mubr.f32.mxu0 %v627
    %808 = vmatmul.mubr.f32.gmra.mxu0 %v623
    %v809 = vpop.f32.mrf.mxu0
    %v810 = vadd.f32 %v736, %v809
    %v811 = vpop.f32.mrf.mxu0
    %v812 = vadd.f32 %v740, %v811
    %813 = vmatprep.mubr.f32.mxu0 %v628
    %814 = vmatmul.mubr.f32.gmra.mxu0 %v624
    %v815 = vpop.f32.mrf.mxu0
    %v816 = vadd.f32 %v736, %v815
    %v817 = vpop.f32.mrf.mxu0
    %v818 = vadd.f32 %v740, %v817
    %819 = vmatprep.mubr.f32.mxu0 %v629
    %820 = vmatmul.mubr.f32.gmra.mxu0 %v625
    %v821 = vpop.f32.mrf.mxu0
    %v822 = vadd.f32 %v736, %v821
    %v823 = vpop.f32.mrf.mxu0
    %v824 = vadd.f32 %v740, %v823
    %825 = vmatprep.mubr.f32.mxu0 %v630
    %826 = vmatmul.mubr.f32.gmra.mxu0 %v626
    %v827 = vpop.f32.mrf.mxu0
    %v828 = vadd.f32 %v736, %v827
    %v829 = vpop.f32.mrf.mxu0
    %v830 = vadd.f32 %v740, %v829
    %831 = vdwg.mxu0
    %832 = vmatprep.subr.mxu0 %v730
    %833 = vmatpush1.msra.mxu0 %v729
    %834 = vmatprep.subr.mxu0 %v728
    %835 = vmatpush1.msra.mxu0 %v727
    %836 = vmatprep.subr.mxu0 %v726
    %837 = vmatpush1.msra.mxu0 %v725
    %838 = vmatprep.subr.mxu0 %v724
    %839 = vmatpush1.msra.mxu0 %v723
    %840 = vmatprep.subr.mxu0 %v722
    %841 = vmatpush1.msra.mxu0 %v721
    %842 = vmatprep.subr.mxu0 %v720
    %843 = vmatpush1.msra.mxu0 %v719
    %844 = vmatprep.subr.mxu0 %v718
    %845 = vmatpush1.msra.mxu0 %v717
    %846 = vmatprep.subr.mxu0 %v716
    %847 = vmatpush1.msra.mxu0 %v715
    %848 = vmatprep.subr.mxu0 %v714
    %849 = vmatpush1.msra.mxu0 %v713
    %850 = vmatprep.subr.mxu0 %v712
    %851 = vmatpush1.msra.mxu0 %v711
    %852 = vmatprep.subr.mxu0 %v710
    %853 = vmatpush1.msra.mxu0 %v709
    %854 = vmatprep.subr.mxu0 %v708
    %855 = vmatpush1.msra.mxu0 %v707
    %856 = vmatprep.subr.mxu0 %v706
    %857 = vmatpush1.msra.mxu0 %v705
    %858 = vmatprep.subr.mxu0 %v704
    %859 = vmatpush1.msra.mxu0 %v703
    %860 = vmatprep.subr.mxu0 %v702
    %861 = vmatpush1.msra.mxu0 %v701
    %862 = vmatprep.subr.mxu0 %v700
    %863 = vmatpush1.msra.mxu0 %v699
    %864 = vmatprep.subr.mxu0 0.0
    %865 = vmatpush2.msra.mxu0 0.0
    %866 = vmatprep.subr.mxu0 0.0
    %867 = vmatpush2.msra.mxu0 0.0
    %868 = vmatprep.subr.mxu0 0.0
    %869 = vmatpush2.msra.mxu0 0.0
    %870 = vmatprep.subr.mxu0 0.0
    %871 = vmatpush2.msra.mxu0 0.0
    %872 = vmatprep.subr.mxu0 0.0
    %873 = vmatpush2.msra.mxu0 0.0
    %874 = vmatprep.subr.mxu0 0.0
    %875 = vmatpush2.msra.mxu0 0.0
    %876 = vmatprep.subr.mxu0 0.0
    %877 = vmatpush2.msra.mxu0 0.0
    %878 = vmatprep.subr.mxu0 0.0
    %879 = vmatpush2.msra.mxu0 0.0
    %880 = vmatprep.subr.mxu0 0.0
    %881 = vmatpush2.msra.mxu0 0.0
    %882 = vmatprep.subr.mxu0 0.0
    %883 = vmatpush2.msra.mxu0 0.0
    %884 = vmatprep.subr.mxu0 0.0
    %885 = vmatpush2.msra.mxu0 0.0
    %886 = vmatprep.subr.mxu0 0.0
    %887 = vmatpush2.msra.mxu0 0.0
    %888 = vmatprep.subr.mxu0 0.0
    %889 = vmatpush2.msra.mxu0 0.0
    %890 = vmatprep.subr.mxu0 0.0
    %891 = vmatpush2.msra.mxu0 0.0
    %892 = vmatprep.subr.mxu0 0.0
    %893 = vmatpush2.msra.mxu0 0.0
    %894 = vmatprep.subr.mxu0 0.0
    %895 = vmatpush2.msra.mxu0 0.0
    %896 = vmatprep.mubr.f32.mxu0 0.0
    %897 = vmatmul.mubr.f32.gmra.mxu0 %v631
    %v898 = vpop.f32.mrf.mxu0
    %v899 = vadd.f32 %v810, %v898
    %v900 = vpop.f32.mrf.mxu0
    %v901 = vadd.f32 %v812, %v900
    %902 = vmatprep.mubr.f32.mxu0 0.0
    %903 = vmatmul.mubr.f32.gmra.mxu0 %v632
    %v904 = vpop.f32.mrf.mxu0
    %v905 = vadd.f32 %v816, %v904
    %v906 = vpop.f32.mrf.mxu0
    %v907 = vadd.f32 %v818, %v906
    %908 = vmatprep.mubr.f32.mxu0 0.0
    %909 = vmatmul.mubr.f32.gmra.mxu0 %v633
    %v910 = vpop.f32.mrf.mxu0
    %v911 = vadd.f32 %v822, %v910
    %v912 = vpop.f32.mrf.mxu0
    %v913 = vadd.f32 %v824, %v912
    %914 = vmatprep.mubr.f32.mxu0 0.0
    %915 = vmatmul.mubr.f32.gmra.mxu0 %v634
    %v916 = vpop.f32.mrf.mxu0
    %v917 = vadd.f32 %v828, %v916
    %v918 = vpop.f32.mrf.mxu0
    %v919 = vadd.f32 %v830, %v918
    %920 = vdwg.mxu0
    %v921 = vmax.f32 %v899, 0.0
    %v922 = vmax.f32 %v901, 0.0
    %v923 = vmax.f32 %v905, 0.0
    %v924 = vmax.f32 %v907, 0.0
    %v925 = vmax.f32 %v911, 0.0
    %v926 = vmax.f32 %v913, 0.0
    %v927 = vmax.f32 %v917, 0.0
    %v928 = vmax.f32 %v919, 0.0
    %v937 = vcombine.low %v921, %v922
    %v938 = vcombine.high %v921, %v922
    %v940 = vunpack.c.l.s4 1983009808
    %v941 = vunpack.c.0.s8 %v940
    %v942 = vlaneseq
    %v943 = vshrl.u32 %v942, 7
    %v944 = vsub.s32 %v941, %v943
    %v945 = vrot.slane %v937, %v944
    %v947 = vunpack.c.l.s4 1983009808
    %v948 = vunpack.c.0.s8 %v947
    %v949 = vlaneseq
    %v950 = vshrl.u32 %v949, 7
    %v951 = vsub.s32 %v948, %v950
    %v952 = vrot.slane %v938, %v951
    %v953 = vcombine.high %v945, %v945
    %v954 = vcombine.high %v952, %v952
    %v955 = vcombine.low %v923, %v924
    %v956 = vcombine.high %v923, %v924
    %v958 = vunpack.c.l.s4 1983009808
    %v959 = vunpack.c.0.s8 %v958
    %v960 = vlaneseq
    %v961 = vshrl.u32 %v960, 7
    %v962 = vsub.s32 %v959, %v961
    %v963 = vrot.slane %v955, %v962
    %v965 = vunpack.c.l.s4 1983009808
    %v966 = vunpack.c.0.s8 %v965
    %v967 = vlaneseq
    %v968 = vshrl.u32 %v967, 7
    %v969 = vsub.s32 %v966, %v968
    %v970 = vrot.slane %v956, %v969
    %v971 = vcombine.high %v963, %v963
    %v972 = vcombine.high %v970, %v970
    %v973 = vcombine.low %v925, %v926
    %v974 = vcombine.high %v925, %v926
    %v976 = vunpack.c.l.s4 1983009808
    %v977 = vunpack.c.0.s8 %v976
    %v978 = vlaneseq
    %v979 = vshrl.u32 %v978, 7
    %v980 = vsub.s32 %v977, %v979
    %v981 = vrot.slane %v973, %v980
    %v983 = vunpack.c.l.s4 1983009808
    %v984 = vunpack.c.0.s8 %v983
    %v985 = vlaneseq
    %v986 = vshrl.u32 %v985, 7
    %v987 = vsub.s32 %v984, %v986
    %v988 = vrot.slane %v974, %v987
    %v989 = vcombine.high %v981, %v981
    %v990 = vcombine.high %v988, %v988
    %v991 = vcombine.low %v927, %v928
    %v992 = vcombine.high %v927, %v928
    %v994 = vunpack.c.l.s4 1983009808
    %v995 = vunpack.c.0.s8 %v994
    %v996 = vlaneseq
    %v997 = vshrl.u32 %v996, 7
    %v998 = vsub.s32 %v995, %v997
    %v999 = vrot.slane %v991, %v998
    %v1001 = vunpack.c.l.s4 1983009808
    %v1002 = vunpack.c.0.s8 %v1001
    %v1003 = vlaneseq
    %v1004 = vshrl.u32 %v1003, 7
    %v1005 = vsub.s32 %v1002, %v1004
    %v1006 = vrot.slane %v992, %v1005
    %v1007 = vcombine.high %v999, %v999
    %v1008 = vcombine.high %v1006, %v1006
    %v1010 = vunpack.c.l.s4 1983009808
    %v1011 = vunpack.c.0.s8 %v1010
    %v1012 = vlaneseq
    %v1013 = vshrl.u32 %v1012, 7
    %v1014 = vsub.s32 %v1011, %v1013
    %v1015 = vrot.slane %v945, %v1014
    %v1016 = vcombine.high %v1015, %v1015
    %v1018 = vunpack.c.l.s4 1983009808
    %v1019 = vunpack.c.0.s8 %v1018
    %v1020 = vlaneseq
    %v1021 = vshrl.u32 %v1020, 7
    %v1022 = vsub.s32 %v1019, %v1021
    %v1023 = vrot.slane %v953, %v1022
    %v1024 = vcombine.high %v1023, %v1023
    %v1026 = vunpack.c.l.s4 1983009808
    %v1027 = vunpack.c.0.s8 %v1026
    %v1028 = vlaneseq
    %v1029 = vshrl.u32 %v1028, 7
    %v1030 = vsub.s32 %v1027, %v1029
    %v1031 = vrot.slane %v952, %v1030
    %v1032 = vcombine.high %v1031, %v1031
    %v1034 = vunpack.c.l.s4 1983009808
    %v1035 = vunpack.c.0.s8 %v1034
    %v1036 = vlaneseq
    %v1037 = vshrl.u32 %v1036, 7
    %v1038 = vsub.s32 %v1035, %v1037
    %v1039 = vrot.slane %v954, %v1038
    %v1040 = vcombine.high %v1039, %v1039
    %v1042 = vunpack.c.l.s4 1983009808
    %v1043 = vunpack.c.0.s8 %v1042
    %v1044 = vlaneseq
    %v1045 = vshrl.u32 %v1044, 7
    %v1046 = vsub.s32 %v1043, %v1045
    %v1047 = vrot.slane %v963, %v1046
    %v1048 = vcombine.high %v1047, %v1047
    %v1050 = vunpack.c.l.s4 1983009808
    %v1051 = vunpack.c.0.s8 %v1050
    %v1052 = vlaneseq
    %v1053 = vshrl.u32 %v1052, 7
    %v1054 = vsub.s32 %v1051, %v1053
    %v1055 = vrot.slane %v971, %v1054
    %v1056 = vcombine.high %v1055, %v1055
    %v1058 = vunpack.c.l.s4 1983009808
    %v1059 = vunpack.c.0.s8 %v1058
    %v1060 = vlaneseq
    %v1061 = vshrl.u32 %v1060, 7
    %v1062 = vsub.s32 %v1059, %v1061
    %v1063 = vrot.slane %v970, %v1062
    %v1064 = vcombine.high %v1063, %v1063
    %v1066 = vunpack.c.l.s4 1983009808
    %v1067 = vunpack.c.0.s8 %v1066
    %v1068 = vlaneseq
    %v1069 = vshrl.u32 %v1068, 7
    %v1070 = vsub.s32 %v1067, %v1069
    %v1071 = vrot.slane %v972, %v1070
    %v1072 = vcombine.high %v1071, %v1071
    %v1074 = vunpack.c.l.s4 1983009808
    %v1075 = vunpack.c.0.s8 %v1074
    %v1076 = vlaneseq
    %v1077 = vshrl.u32 %v1076, 7
    %v1078 = vsub.s32 %v1075, %v1077
    %v1079 = vrot.slane %v981, %v1078
    %v1080 = vcombine.high %v1079, %v1079
    %v1082 = vunpack.c.l.s4 1983009808
    %v1083 = vunpack.c.0.s8 %v1082
    %v1084 = vlaneseq
    %v1085 = vshrl.u32 %v1084, 7
    %v1086 = vsub.s32 %v1083, %v1085
    %v1087 = vrot.slane %v989, %v1086
    %v1088 = vcombine.high %v1087, %v1087
    %v1090 = vunpack.c.l.s4 1983009808
    %v1091 = vunpack.c.0.s8 %v1090
    %v1092 = vlaneseq
    %v1093 = vshrl.u32 %v1092, 7
    %v1094 = vsub.s32 %v1091, %v1093
    %v1095 = vrot.slane %v988, %v1094
    %v1096 = vcombine.high %v1095, %v1095
    %v1098 = vunpack.c.l.s4 1983009808
    %v1099 = vunpack.c.0.s8 %v1098
    %v1100 = vlaneseq
    %v1101 = vshrl.u32 %v1100, 7
    %v1102 = vsub.s32 %v1099, %v1101
    %v1103 = vrot.slane %v990, %v1102
    %v1104 = vcombine.high %v1103, %v1103
    %v1106 = vunpack.c.l.s4 1983009808
    %v1107 = vunpack.c.0.s8 %v1106
    %v1108 = vlaneseq
    %v1109 = vshrl.u32 %v1108, 7
    %v1110 = vsub.s32 %v1107, %v1109
    %v1111 = vrot.slane %v999, %v1110
    %v1112 = vcombine.high %v1111, %v1111
    %v1114 = vunpack.c.l.s4 1983009808
    %v1115 = vunpack.c.0.s8 %v1114
    %v1116 = vlaneseq
    %v1117 = vshrl.u32 %v1116, 7
    %v1118 = vsub.s32 %v1115, %v1117
    %v1119 = vrot.slane %v1007, %v1118
    %v1120 = vcombine.high %v1119, %v1119
    %v1122 = vunpack.c.l.s4 1983009808
    %v1123 = vunpack.c.0.s8 %v1122
    %v1124 = vlaneseq
    %v1125 = vshrl.u32 %v1124, 7
    %v1126 = vsub.s32 %v1123, %v1125
    %v1127 = vrot.slane %v1006, %v1126
    %v1128 = vcombine.high %v1127, %v1127
    %v1130 = vunpack.c.l.s4 1983009808
    %v1131 = vunpack.c.0.s8 %v1130
    %v1132 = vlaneseq
    %v1133 = vshrl.u32 %v1132, 7
    %v1134 = vsub.s32 %v1131, %v1133
    %v1135 = vrot.slane %v1008, %v1134
    %v1136 = vcombine.high %v1135, %v1135
    %vm1169 = vcmask 1041408
    %v1170 = vsel %vm1169, %v1015, -inf
    %v1171 = vrot.slane %v1170, 4
    %v1172 = vmax.f32 %v1170, %v1171
    %v1173 = vrot.slane %v1172, 2
    %v1174 = vmax.f32 %v1172, %v1173
    %v1175 = vrot.slane %v1174, 1
    %v1176 = vmax.f32 %v1174, %v1175
    %v1177 = vsel %vm1169, %v1016, -inf
    %v1178 = vrot.slane %v1177, 4
    %v1179 = vmax.f32 %v1177, %v1178
    %v1180 = vrot.slane %v1179, 2
    %v1181 = vmax.f32 %v1179, %v1180
    %v1182 = vrot.slane %v1181, 1
    %v1183 = vmax.f32 %v1181, %v1182
    %v1184 = vsel %vm1169, %v1023, -inf
    %v1185 = vrot.slane %v1184, 4
    %v1186 = vmax.f32 %v1184, %v1185
    %v1187 = vrot.slane %v1186, 2
    %v1188 = vmax.f32 %v1186, %v1187
    %v1189 = vrot.slane %v1188, 1
    %v1190 = vmax.f32 %v1188, %v1189
    %v1191 = vsel %vm1169, %v1024, -inf
    %v1192 = vrot.slane %v1191, 4
    %v1193 = vmax.f32 %v1191, %v1192
    %v1194 = vrot.slane %v1193, 2
    %v1195 = vmax.f32 %v1193, %v1194
    %v1196 = vrot.slane %v1195, 1
    %v1197 = vmax.f32 %v1195, %v1196
    %v1198 = vsel %vm1169, %v1031, -inf
    %v1199 = vrot.slane %v1198, 4
    %v1200 = vmax.f32 %v1198, %v1199
    %v1201 = vrot.slane %v1200, 2
    %v1202 = vmax.f32 %v1200, %v1201
    %v1203 = vrot.slane %v1202, 1
    %v1204 = vmax.f32 %v1202, %v1203
    %v1205 = vsel %vm1169, %v1032, -inf
    %v1206 = vrot.slane %v1205, 4
    %v1207 = vmax.f32 %v1205, %v1206
    %v1208 = vrot.slane %v1207, 2
    %v1209 = vmax.f32 %v1207, %v1208
    %v1210 = vrot.slane %v1209, 1
    %v1211 = vmax.f32 %v1209, %v1210
    %v1212 = vsel %vm1169, %v1039, -inf
    %v1213 = vrot.slane %v1212, 4
    %v1214 = vmax.f32 %v1212, %v1213
    %v1215 = vrot.slane %v1214, 2
    %v1216 = vmax.f32 %v1214, %v1215
    %v1217 = vrot.slane %v1216, 1
    %v1218 = vmax.f32 %v1216, %v1217
    %v1219 = vsel %vm1169, %v1040, -inf
    %v1220 = vrot.slane %v1219, 4
    %v1221 = vmax.f32 %v1219, %v1220
    %v1222 = vrot.slane %v1221, 2
    %v1223 = vmax.f32 %v1221, %v1222
    %v1224 = vrot.slane %v1223, 1
    %v1225 = vmax.f32 %v1223, %v1224
    %v1226 = vsel %vm1169, %v1047, -inf
    %v1227 = vrot.slane %v1226, 4
    %v1228 = vmax.f32 %v1226, %v1227
    %v1229 = vrot.slane %v1228, 2
    %v1230 = vmax.f32 %v1228, %v1229
    %v1231 = vrot.slane %v1230, 1
    %v1232 = vmax.f32 %v1230, %v1231
    %v1233 = vsel %vm1169, %v1048, -inf
    %v1234 = vrot.slane %v1233, 4
    %v1235 = vmax.f32 %v1233, %v1234
    %v1236 = vrot.slane %v1235, 2
    %v1237 = vmax.f32 %v1235, %v1236
    %v1238 = vrot.slane %v1237, 1
    %v1239 = vmax.f32 %v1237, %v1238
    %v1240 = vsel %vm1169, %v1055, -inf
    %v1241 = vrot.slane %v1240, 4
    %v1242 = vmax.f32 %v1240, %v1241
    %v1243 = vrot.slane %v1242, 2
    %v1244 = vmax.f32 %v1242, %v1243
    %v1245 = vrot.slane %v1244, 1
    %v1246 = vmax.f32 %v1244, %v1245
    %v1247 = vsel %vm1169, %v1056, -inf
    %v1248 = vrot.slane %v1247, 4
    %v1249 = vmax.f32 %v1247, %v1248
    %v1250 = vrot.slane %v1249, 2
    %v1251 = vmax.f32 %v1249, %v1250
    %v1252 = vrot.slane %v1251, 1
    %v1253 = vmax.f32 %v1251, %v1252
    %v1254 = vsel %vm1169, %v1063, -inf
    %v1255 = vrot.slane %v1254, 4
    %v1256 = vmax.f32 %v1254, %v1255
    %v1257 = vrot.slane %v1256, 2
    %v1258 = vmax.f32 %v1256, %v1257
    %v1259 = vrot.slane %v1258, 1
    %v1260 = vmax.f32 %v1258, %v1259
    %v1261 = vsel %vm1169, %v1064, -inf
    %v1262 = vrot.slane %v1261, 4
    %v1263 = vmax.f32 %v1261, %v1262
    %v1264 = vrot.slane %v1263, 2
    %v1265 = vmax.f32 %v1263, %v1264
    %v1266 = vrot.slane %v1265, 1
    %v1267 = vmax.f32 %v1265, %v1266
    %v1268 = vsel %vm1169, %v1071, -inf
    %v1269 = vrot.slane %v1268, 4
    %v1270 = vmax.f32 %v1268, %v1269
    %v1271 = vrot.slane %v1270, 2
    %v1272 = vmax.f32 %v1270, %v1271
    %v1273 = vrot.slane %v1272, 1
    %v1274 = vmax.f32 %v1272, %v1273
    %v1275 = vsel %vm1169, %v1072, -inf
    %v1276 = vrot.slane %v1275, 4
    %v1277 = vmax.f32 %v1275, %v1276
    %v1278 = vrot.slane %v1277, 2
    %v1279 = vmax.f32 %v1277, %v1278
    %v1280 = vrot.slane %v1279, 1
    %v1281 = vmax.f32 %v1279, %v1280
    %v1282 = vsel %vm1169, %v1079, -inf
    %v1283 = vrot.slane %v1282, 4
    %v1284 = vmax.f32 %v1282, %v1283
    %v1285 = vrot.slane %v1284, 2
    %v1286 = vmax.f32 %v1284, %v1285
    %v1287 = vrot.slane %v1286, 1
    %v1288 = vmax.f32 %v1286, %v1287
    %v1289 = vsel %vm1169, %v1080, -inf
    %v1290 = vrot.slane %v1289, 4
    %v1291 = vmax.f32 %v1289, %v1290
    %v1292 = vrot.slane %v1291, 2
    %v1293 = vmax.f32 %v1291, %v1292
    %v1294 = vrot.slane %v1293, 1
    %v1295 = vmax.f32 %v1293, %v1294
    %v1296 = vsel %vm1169, %v1087, -inf
    %v1297 = vrot.slane %v1296, 4
    %v1298 = vmax.f32 %v1296, %v1297
    %v1299 = vrot.slane %v1298, 2
    %v1300 = vmax.f32 %v1298, %v1299
    %v1301 = vrot.slane %v1300, 1
    %v1302 = vmax.f32 %v1300, %v1301
    %v1303 = vsel %vm1169, %v1088, -inf
    %v1304 = vrot.slane %v1303, 4
    %v1305 = vmax.f32 %v1303, %v1304
    %v1306 = vrot.slane %v1305, 2
    %v1307 = vmax.f32 %v1305, %v1306
    %v1308 = vrot.slane %v1307, 1
    %v1309 = vmax.f32 %v1307, %v1308
    %v1310 = vsel %vm1169, %v1095, -inf
    %v1311 = vrot.slane %v1310, 4
    %v1312 = vmax.f32 %v1310, %v1311
    %v1313 = vrot.slane %v1312, 2
    %v1314 = vmax.f32 %v1312, %v1313
    %v1315 = vrot.slane %v1314, 1
    %v1316 = vmax.f32 %v1314, %v1315
    %v1317 = vsel %vm1169, %v1096, -inf
    %v1318 = vrot.slane %v1317, 4
    %v1319 = vmax.f32 %v1317, %v1318
    %v1320 = vrot.slane %v1319, 2
    %v1321 = vmax.f32 %v1319, %v1320
    %v1322 = vrot.slane %v1321, 1
    %v1323 = vmax.f32 %v1321, %v1322
    %v1324 = vsel %vm1169, %v1103, -inf
    %v1325 = vrot.slane %v1324, 4
    %v1326 = vmax.f32 %v1324, %v1325
    %v1327 = vrot.slane %v1326, 2
    %v1328 = vmax.f32 %v1326, %v1327
    %v1329 = vrot.slane %v1328, 1
    %v1330 = vmax.f32 %v1328, %v1329
    %v1331 = vsel %vm1169, %v1104, -inf
    %v1332 = vrot.slane %v1331, 4
    %v1333 = vmax.f32 %v1331, %v1332
    %v1334 = vrot.slane %v1333, 2
    %v1335 = vmax.f32 %v1333, %v1334
    %v1336 = vrot.slane %v1335, 1
    %v1337 = vmax.f32 %v1335, %v1336
    %v1338 = vsel %vm1169, %v1111, -inf
    %v1339 = vrot.slane %v1338, 4
    %v1340 = vmax.f32 %v1338, %v1339
    %v1341 = vrot.slane %v1340, 2
    %v1342 = vmax.f32 %v1340, %v1341
    %v1343 = vrot.slane %v1342, 1
    %v1344 = vmax.f32 %v1342, %v1343
    %v1345 = vsel %vm1169, %v1112, -inf
    %v1346 = vrot.slane %v1345, 4
    %v1347 = vmax.f32 %v1345, %v1346
    %v1348 = vrot.slane %v1347, 2
    %v1349 = vmax.f32 %v1347, %v1348
    %v1350 = vrot.slane %v1349, 1
    %v1351 = vmax.f32 %v1349, %v1350
    %v1352 = vsel %vm1169, %v1119, -inf
    %v1353 = vrot.slane %v1352, 4
    %v1354 = vmax.f32 %v1352, %v1353
    %v1355 = vrot.slane %v1354, 2
    %v1356 = vmax.f32 %v1354, %v1355
    %v1357 = vrot.slane %v1356, 1
    %v1358 = vmax.f32 %v1356, %v1357
    %v1359 = vsel %vm1169, %v1120, -inf
    %v1360 = vrot.slane %v1359, 4
    %v1361 = vmax.f32 %v1359, %v1360
    %v1362 = vrot.slane %v1361, 2
    %v1363 = vmax.f32 %v1361, %v1362
    %v1364 = vrot.slane %v1363, 1
    %v1365 = vmax.f32 %v1363, %v1364
    %v1366 = vsel %vm1169, %v1127, -inf
    %v1367 = vrot.slane %v1366, 4
    %v1368 = vmax.f32 %v1366, %v1367
    %v1369 = vrot.slane %v1368, 2
    %v1370 = vmax.f32 %v1368, %v1369
    %v1371 = vrot.slane %v1370, 1
    %v1372 = vmax.f32 %v1370, %v1371
    %v1373 = vsel %vm1169, %v1128, -inf
    %v1374 = vrot.slane %v1373, 4
    %v1375 = vmax.f32 %v1373, %v1374
    %v1376 = vrot.slane %v1375, 2
    %v1377 = vmax.f32 %v1375, %v1376
    %v1378 = vrot.slane %v1377, 1
    %v1379 = vmax.f32 %v1377, %v1378
    %v1380 = vsel %vm1169, %v1135, -inf
    %v1381 = vrot.slane %v1380, 4
    %v1382 = vmax.f32 %v1380, %v1381
    %v1383 = vrot.slane %v1382, 2
    %v1384 = vmax.f32 %v1382, %v1383
    %v1385 = vrot.slane %v1384, 1
    %v1386 = vmax.f32 %v1384, %v1385
    %v1387 = vsel %vm1169, %v1136, -inf
    %v1388 = vrot.slane %v1387, 4
    %v1389 = vmax.f32 %v1387, %v1388
    %v1390 = vrot.slane %v1389, 2
    %v1391 = vmax.f32 %v1389, %v1390
    %v1392 = vrot.slane %v1391, 1
    %v1393 = vmax.f32 %v1391, %v1392
    %vm1426 = vcmask 1041409
    %v1427 = vsel %vm1426, %v1190, %v1176
    %vm1428 = vcmask 1042434
    %v1429 = vsel %vm1428, %v1204, %v1427
    %vm1430 = vcmask 1043459
    %v1431 = vsel %vm1430, %v1218, %v1429
    %vm1432 = vcmask 1044484
    %v1433 = vsel %vm1432, %v1232, %v1431
    %vm1434 = vcmask 1045509
    %v1435 = vsel %vm1434, %v1246, %v1433
    %vm1436 = vcmask 1046534
    %v1437 = vsel %vm1436, %v1260, %v1435
    %vm1438 = vcmask 1047559
    %v1439 = vsel %vm1438, %v1274, %v1437
    %v1440 = vsel %vm1426, %v1197, %v1183
    %v1441 = vsel %vm1428, %v1211, %v1440
    %v1442 = vsel %vm1430, %v1225, %v1441
    %v1443 = vsel %vm1432, %v1239, %v1442
    %v1444 = vsel %vm1434, %v1253, %v1443
    %v1445 = vsel %vm1436, %v1267, %v1444
    %v1446 = vsel %vm1438, %v1281, %v1445
    %v1447 = vsel %vm1426, %v1302, %v1288
    %v1448 = vsel %vm1428, %v1316, %v1447
    %v1449 = vsel %vm1430, %v1330, %v1448
    %v1450 = vsel %vm1432, %v1344, %v1449
    %v1451 = vsel %vm1434, %v1358, %v1450
    %v1452 = vsel %vm1436, %v1372, %v1451
    %v1453 = vsel %vm1438, %v1386, %v1452
    %v1454 = vsel %vm1426, %v1309, %v1295
    %v1455 = vsel %vm1428, %v1323, %v1454
    %v1456 = vsel %vm1430, %v1337, %v1455
    %v1457 = vsel %vm1432, %v1351, %v1456
    %v1458 = vsel %vm1434, %v1365, %v1457
    %v1459 = vsel %vm1436, %v1379, %v1458
    %v1460 = vsel %vm1438, %v1393, %v1459
    %1465 = vst [vmem:[#allocation11] sm:$0xff] %v1439
    %1466 = vst [vmem:[#allocation11 + $0x8] sm:$0xff] %v1446
    %1467 = vst [vmem:[#allocation11 + $0x10] sm:$0xff] %v1453
    %1468 = vst [vmem:[#allocation11 + $0x18] sm:$0xff] %v1460
    // Predicated region
    $region50: #{encoder_forward.1} parent=1 // pred_check
      _
    $region51: #{encoder_forward.1} parent=1 // pred_check_branch
      %1470 = sbr.rel (0) target = $region53
    $region52: #{encoder_forward.1} parent=1 // pred_region
      %s1472 = ssub.s32 512, 512
      %1473 = vsyncadd [#allocation8], %s1472
      %s1474 = sshll.u32 [#allocation11], 4
      %s1475 = int_to_ptr.vmem [resolvable:$true] %s1474
      %1480 = dma.vmem_to_hbm [thread:$0]  %s1475, 512, %s9, [#allocation8], 256, 256, 16
    $region53: #{encoder_forward.1} parent=1 // pred_fallthru
      _
    // Predicated region
    $region54: #{encoder_forward.1} parent=1 // pred_check
      _
    $region55: #{encoder_forward.1} parent=1 // pred_check_branch
      %1482 = sbr.rel (0) target = $region57
    $region56: #{encoder_forward.1} parent=1 // pred_region
      %1483 = dma.done [#allocation8], 512
    $region57: #{encoder_forward.1} parent=1 // pred_fallthru
      _
    %1484 = vsyncpa [#allocation7], 1
    %1485 = vsyncpa [#allocation10], 1
    %1486 = vsyncpa [#allocation8], 1

</llo_original>
